<compile_context>
chip_gen: v6e
topology: v6e:2x2x1
jax: 0.10.0
libtpu: 0.0.40
codegen_flags: <defaults>
</compile_context>

<pallas_src>
import jax
import jax.numpy as jnp
from jax.experimental import pallas as pl
from jax.experimental.pallas import tpu as pltpu

EPS = 1e-5


def _make_normalize_kernel(chunk_n, num_chunks):
    def kernel(x_ref, g_ref, b_ref, o_ref):
        # x_ref: (1, C, tile_n); g_ref/b_ref: (1, C, 1) float32.
        c = x_ref.shape[1]
        inv_c = jnp.float32(1.0 / c)
        g = g_ref[0]  # (C, 1) f32
        b = b_ref[0]  # (C, 1) f32

        def process(start):
            xc = x_ref[0, :, pl.ds(start, chunk_n)].astype(jnp.float32)  # (C, chunk)
            # Two-pass stats over the channel (sublane) axis, per lane.
            mean = jnp.sum(xc, axis=0, keepdims=True) * inv_c            # (1, chunk)
            d = xc - mean
            var = jnp.sum(d * d, axis=0, keepdims=True) * inv_c          # (1, chunk)
            y = d * jax.lax.rsqrt(var + jnp.float32(EPS))
            y = y * g + b                                                # affine
            o_ref[0, :, pl.ds(start, chunk_n)] = y.astype(o_ref.dtype)

        if num_chunks == 1:
            process(0)
        else:
            def body(j, carry):
                process(pl.multiple_of(j * chunk_n, chunk_n))
                return carry
            jax.lax.fori_loop(0, num_chunks, body, 0, unroll=num_chunks <= 4)

    return kernel


def normalize(x, gamma, beta, *, target_step_bytes=4 << 20,
              tile_n=None, chunk_n=None):
    """Equivalent of Normalize(nn.LayerNorm(C))(x) for x of shape (B, C, N)."""
    B, C, N = x.shape
    dtype_bytes = jnp.dtype(x.dtype).itemsize

    # Lane chunk inside the kernel: keep ~3 f32 (C, chunk) temps under ~512 KiB
    # so the working set never spills, independent of how big the DMA tile is.
    if chunk_n is None:
        chunk_n = (512 * 1024) // (3 * 4 * C)
    chunk_n = max(128, min(2048, (chunk_n // 128) * 128))

    # DMA tile: target ~target_step_bytes of in+out per grid step (amortizes
    # the per-step pipeline overhead), rounded to a multiple of chunk_n.
    if tile_n is None:
        tile_n = target_step_bytes // (2 * C * dtype_bytes)
    tile_n = max(chunk_n, (tile_n // chunk_n) * chunk_n)
    n_ceil = pl.cdiv(N, chunk_n) * chunk_n
    tile_n = min(tile_n, n_ceil)

    # Keep double-buffered (in + out) blocks under a conservative ceiling that
    # fits every generation (v7x: 32 MiB scoped / 64 MiB physical).
    max_io_bytes = 20 << 20
    io_cap = max(chunk_n, (max_io_bytes // (4 * C * dtype_bytes)) // chunk_n * chunk_n)
    tile_n = min(tile_n, io_cap)

    # Make sure v7x's two TensorCores both get work (>= 4 grid steps if possible).
    while B * pl.cdiv(N, tile_n) < 4 and tile_n > chunk_n:
        tile_n = max(chunk_n, ((tile_n // 2) // chunk_n) * chunk_n)

    num_chunks = tile_n // chunk_n
    grid = (B, pl.cdiv(N, tile_n))

    # Explicit VMEM budget: double-buffered IO + params + chunk working set.
    io_bytes = 4 * C * tile_n * dtype_bytes
    param_bytes = 2 * 2 * C * 4
    scratch_bytes = 3 * C * chunk_n * 4
    vmem_limit = min(28 << 20,
                     max(8 << 20,
                         int(1.5 * (io_bytes + param_bytes + scratch_bytes)) + (1 << 20)))

    g = gamma.astype(jnp.float32).reshape(1, C, 1)
    b = beta.astype(jnp.float32).reshape(1, C, 1)

    return pl.pallas_call(
        _make_normalize_kernel(chunk_n, num_chunks),
        out_shape=jax.ShapeDtypeStruct((B, C, N), x.dtype),
        grid_spec=pltpu.PrefetchScalarGridSpec(
            num_scalar_prefetch=0,
            grid=grid,
            in_specs=[
                pl.BlockSpec((1, C, tile_n), lambda i, j: (i, 0, j)),
                pl.BlockSpec((1, C, 1), lambda i, j: (0, 0, 0)),
                pl.BlockSpec((1, C, 1), lambda i, j: (0, 0, 0)),
            ],
            out_specs=pl.BlockSpec((1, C, tile_n), lambda i, j: (i, 0, j)),
        ),
        compiler_params=pltpu.CompilerParams(
            dimension_semantics=("parallel", "parallel"),
            vmem_limit_bytes=vmem_limit),
    )(x, g, b)


def _reference(x, gamma, beta):
    # Pure-JAX reference matching PyTorch: transpose -> LayerNorm(C) -> transpose.
    xt = jnp.transpose(x, (0, 2, 1)).astype(jnp.float32)       # (B, N, C)
    mean = jnp.mean(xt, axis=-1, keepdims=True)
    var = jnp.mean((xt - mean) ** 2, axis=-1, keepdims=True)
    y = (xt - mean) / jnp.sqrt(var + EPS)
    y = y * gamma + beta
    return jnp.transpose(y, (0, 2, 1)).astype(x.dtype)


if __name__ == "__main__":
    key = jax.random.PRNGKey(0)
    kx, kg, kb, kx2 = jax.random.split(key, 4)

    # Canonical small shape: (B, C, N), LayerNorm over C.
    B, C, N = 2, 32, 16
    x = jax.random.normal(kx, (B, C, N), dtype=jnp.float32)
    gamma = 1.0 + 0.1 * jax.random.normal(kg, (C,), dtype=jnp.float32)
    beta = 0.1 * jax.random.normal(kb, (C,), dtype=jnp.float32)

    out = jax.block_until_ready(normalize(x, gamma, beta))
    ref = _reference(x, gamma, beta)
    assert out.shape == (B, C, N)
    assert jnp.allclose(out, ref, atol=1e-4, rtol=1e-4), "mismatch vs reference"

    # Exercise in-kernel lane chunking, multiple grid tiles, and the ragged
    # (masked) last block without any wrapper pad/slice.
    B2, C2, N2 = 2, 16, 520
    x2 = jax.random.normal(kx2, (B2, C2, N2), dtype=jnp.float32)
    g2 = jnp.linspace(0.5, 1.5, C2, dtype=jnp.float32)
    b2 = jnp.linspace(-0.2, 0.2, C2, dtype=jnp.float32)
    out2 = jax.block_until_ready(normalize(x2, g2, b2, tile_n=256, chunk_n=128))
    ref2 = _reference(x2, g2, b2)
    assert out2.shape == (B2, C2, N2)
    assert jnp.allclose(out2, ref2, atol=1e-4, rtol=1e-4), "mismatch vs reference (ragged)"

    print("KERNEL_OK")
</pallas_src>

<mosaic_0001>
module attributes {stable_mosaic.version = 11 : i64} {
  func.func @kernel(%arg0: i32, %arg1: i32, %arg2: memref<1x32x1280xf32, #tpu.memory_space<vmem>>, %arg3: memref<1x32x1xf32, #tpu.memory_space<vmem>>, %arg4: memref<1x32x1xf32, #tpu.memory_space<vmem>>, %arg5: memref<1x32x1280xf32, #tpu.memory_space<vmem>>) attributes {dimension_semantics = [#tpu.dimension_semantics<parallel>, #tpu.dimension_semantics<parallel>], iteration_bounds = array<i64: 2, 1>, scalar_prefetch = 0 : i64, scratch_operands = 0 : i64, tpu.core_type = #tpu.core_type<tc>, window_params = [{transform_indices = @transform_0, window_bounds = array<i64: 1, 32, 1280>}, {pipeline_mode = #tpu.pipeline_mode<synchronous>, transform_indices = @transform_1, window_bounds = array<i64: 1, 32, 1>}, {pipeline_mode = #tpu.pipeline_mode<synchronous>, transform_indices = @transform_2, window_bounds = array<i64: 1, 32, 1>}, {transform_indices = @transform_3, window_bounds = array<i64: 1, 32, 1280>}]} {
    %c0 = arith.constant 0 : index
    %c0_0 = arith.constant 0 : index
    %c0_1 = arith.constant 0 : index
    %0 = vector.load %arg3[%c0, %c0_0, %c0_1] : memref<1x32x1xf32, #tpu.memory_space<vmem>>, vector<1x32x1xf32>
    %1 = vector.shape_cast %0 : vector<1x32x1xf32> to vector<32x1xf32>
    %c0_2 = arith.constant 0 : index
    %c0_3 = arith.constant 0 : index
    %c0_4 = arith.constant 0 : index
    %2 = vector.load %arg4[%c0_2, %c0_3, %c0_4] : memref<1x32x1xf32, #tpu.memory_space<vmem>>, vector<1x32x1xf32>
    %3 = vector.shape_cast %2 : vector<1x32x1xf32> to vector<32x1xf32>
    %c0_5 = arith.constant 0 : index
    %c0_6 = arith.constant 0 : index
    %c0_7 = arith.constant 0 : index
    %4 = vector.load %arg2[%c0_5, %c0_6, %c0_7] : memref<1x32x1280xf32, #tpu.memory_space<vmem>>, vector<1x32x1280xf32>
    %5 = vector.shape_cast %4 : vector<1x32x1280xf32> to vector<32x1280xf32>
    %cst = arith.constant dense<0.000000e+00> : vector<1280xf32>
    %6 = vector.multi_reduction <add>, %5, %cst [0] : vector<32x1280xf32> to vector<1280xf32>
    %7 = vector.shape_cast %6 : vector<1280xf32> to vector<1x1280xf32>
    %cst_8 = arith.constant 3.125000e-02 : f32
    %8 = vector.broadcast %cst_8 : f32 to vector<1x1280xf32>
    %9 = arith.mulf %7, %8 : vector<1x1280xf32>
    %10 = vector.broadcast %9 : vector<1x1280xf32> to vector<32x1280xf32>
    %11 = arith.subf %5, %10 : vector<32x1280xf32>
    %12 = arith.mulf %11, %11 : vector<32x1280xf32>
    %cst_9 = arith.constant dense<0.000000e+00> : vector<1280xf32>
    %13 = vector.multi_reduction <add>, %12, %cst_9 [0] : vector<32x1280xf32> to vector<1280xf32>
    %14 = vector.shape_cast %13 : vector<1280xf32> to vector<1x1280xf32>
    %cst_10 = arith.constant 3.125000e-02 : f32
    %15 = vector.broadcast %cst_10 : f32 to vector<1x1280xf32>
    %16 = arith.mulf %14, %15 : vector<1x1280xf32>
    %cst_11 = arith.constant 9.99999974E-6 : f32
    %17 = vector.broadcast %cst_11 : f32 to vector<1x1280xf32>
    %18 = arith.addf %16, %17 : vector<1x1280xf32>
    %19 = math.rsqrt %18 : vector<1x1280xf32>
    %20 = vector.broadcast %19 : vector<1x1280xf32> to vector<32x1280xf32>
    %21 = arith.mulf %11, %20 : vector<32x1280xf32>
    %22 = vector.broadcast %1 : vector<32x1xf32> to vector<32x1280xf32>
    %23 = arith.mulf %21, %22 : vector<32x1280xf32>
    %24 = vector.broadcast %3 : vector<32x1xf32> to vector<32x1280xf32>
    %25 = arith.addf %23, %24 : vector<32x1280xf32>
    %c0_12 = arith.constant 0 : index
    %c0_13 = arith.constant 0 : index
    %c0_14 = arith.constant 0 : index
    %26 = vector.load %arg5[%c0_12, %c0_13, %c0_14] : memref<1x32x1280xf32, #tpu.memory_space<vmem>>, vector<1x32x1280xf32>
    %27 = vector.shape_cast %26 : vector<1x32x1280xf32> to vector<32x1280xf32>
    %28 = vector.shape_cast %25 : vector<32x1280xf32> to vector<1x32x1280xf32>
    tpu.vector_store %arg5[%c0_12, %c0_13, %c0_14], %28 {strides = array<i32>} : memref<1x32x1280xf32, #tpu.memory_space<vmem>>, vector<1x32x1280xf32>,
    return
  }
  func.func @transform_0(%arg0: i32, %arg1: i32) -> (i32, i32, i32) {
    %c0_i32 = arith.constant 0 : i32
    %c0_i32_0 = arith.constant 0 : i32
    return %arg0, %c0_i32, %arg1 : i32, i32, i32
  }
  func.func @transform_1(%arg0: i32, %arg1: i32) -> (i32, i32, i32) {
    %c0_i32 = arith.constant 0 : i32
    %c0_i32_0 = arith.constant 0 : i32
    %c0_i32_1 = arith.constant 0 : i32
    %c0_i32_2 = arith.constant 0 : i32
    return %c0_i32, %c0_i32_0, %c0_i32_1 : i32, i32, i32
  }
  func.func @transform_2(%arg0: i32, %arg1: i32) -> (i32, i32, i32) {
    %c0_i32 = arith.constant 0 : i32
    %c0_i32_0 = arith.constant 0 : i32
    %c0_i32_1 = arith.constant 0 : i32
    %c0_i32_2 = arith.constant 0 : i32
    return %c0_i32, %c0_i32_0, %c0_i32_1 : i32, i32, i32
  }
  func.func @transform_3(%arg0: i32, %arg1: i32) -> (i32, i32, i32) {
    %c0_i32 = arith.constant 0 : i32
    %c0_i32_0 = arith.constant 0 : i32
    return %arg0, %c0_i32, %arg1 : i32, i32, i32
  }
}

</mosaic_0001>

<llo_original>
// kernel: tpu_custom_call.1
$region0: #{tpu_custom_call.1}
  #allocation0 [shape = 'u32[]', space=smem, size = 0x4, offset = 0x4, fixed_abs, tag = 'smem constant byte address 0x4 - core index']
  #allocation1 [shape = 'u32[144,128]{1,0:T(1,128)}', space=vmem, size = 0x12000, scoped, tag = 'internal scratch']
  %s0 = inlined_call_operand.vmem [shape: f32[2,32,16], index: 0, kind: input, shape index: {}]
  %s1 = inlined_call_operand.vmem [shape: f32[1,32,1], index: 1, kind: input, shape index: {}]
  %s2 = inlined_call_operand.vmem [shape: f32[1,32,1], index: 2, kind: input, shape index: {}]
  %s3 = inlined_call_operand.vmem [shape: f32[2,32,16], index: 3, kind: output, shape index: {}]
  %s4 = sld [smem:[#allocation0]]
  $region173: #{tpu_custom_call.1} parent=0
    _
  %s6 = ssub.s32 1, %s4
  %s7 = scalar_select 0, %s6, %s4
  $region1: #{tpu_custom_call.1} parent=0
    #allocation2 [shape = 'u8[327680]{0}', space=vmem, size = 0x50000, scoped, tag = 'input window, operand 0']
    #allocation3 [shape = 'u8[327680]{0}', space=vmem, size = 0x50000, scoped, tag = 'output window, operand 0']
    loop: start=0, step=1, limit=4
    $region2: #{tpu_custom_call.1} parent=1 // loop_pre_header
      _
    $region3: #{tpu_custom_call.1} parent=1 // loop_header
      %s9 = sphi 0, %s13
      %p10 = scmp.ge.s32.totalorder %s9, 4
      %s16 = sphi 0, %s28
      %s17 = sphi 0, %s24
      %s18 = sphi 0, %s16
      %s19 = sphi 0, %s17
      %s20 = sphi 0, %s18
      %s21 = sphi 0, %s19
      %s33 = sphi 0, %s35
      %s36 = sphi 0, %s33
      %s37 = sphi 0, %s36
      %s53 = sphi 0, %s37
      %s57 = sphi 0, %s57
      %s59 = sphi 0, %s57
      %s60 = sphi 0, %s59
      %s74 = sphi 0, %s60
      %s78 = sphi 0, %s78
      %s80 = sphi 0, %s78
      %s81 = sphi 0, %s80
      %s95 = sphi 0, %s81
      %s103 = sphi 0, %s105
      %s106 = sphi 0, %s103
      %s107 = sphi 0, %s106
      %s123 = sphi 0, %s107
    $region4: #{tpu_custom_call.1} parent=1 // loop_header_branch
      %12 = sbr.rel (%p10) target = $region8
    $region5: #{tpu_custom_call.1} parent=1 // loop_body
      %s14 = ssub.s32 %s9, 1
      %s15 = ssub.s32 %s9, 2
      %s22 = sadd.s32 1, %s17
      %p23 = scmp.ge.s32.totalorder %s22, 1
      %s24 = scalar_select %p23, 0, %s22
      %s25 = sadd.s32 1, %s16
      %s26 = scalar_select %p23, %s25, %s16
      %p27 = scmp.ge.s32.totalorder %s26, 2
      %s28 = scalar_select %p27, 0, %s26
      %s29 = ssub.s32 %s16, %s28
      %s30 = ssub.s32 %s17, %s24
      %s31 = sor.u32 %s29, %s30
      %p32 = scmp.eq.s32.totalorder %s31, 0
      %s34 = sadd.s32 %s33, 1
      %s35 = scalar_select %p32, %s33, %s34
      %p38 = pneg %p32
      %p39 = scmp.eq.s32.totalorder %s9, 1
      %p40 = por %p38, %p39
      %p41 = scmp.ne.s32.totalorder %s33, %s36
      %p42 = scmp.eq.s32.totalorder %s9, 0
      %p43 = por %p41, %p42
      %p44 = scmp.ne.s32.totalorder %s33, %s36
      %p45 = scmp.eq.s32.totalorder %s14, 1
      %p46 = por %p44, %p45
      %p47 = scmp.ne.s32.totalorder %s36, %s37
      %p48 = scmp.eq.s32.totalorder %s14, 0
      %p49 = por %p47, %p48
      %p50 = scmp.ne.s32.totalorder %s36, %s37
      %p51 = scmp.eq.s32.totalorder %s15, 1
      %p52 = por %p50, %p51
      %p54 = scmp.ne.s32.totalorder %s37, %s53
      %p55 = scmp.eq.s32.totalorder %s15, 0
      %p56 = por %p54, %p55
      %s58 = sadd.s32 %s57, 1
      %p61 = scmp.eq.s32.totalorder %s9, 1
      %p62 = scmp.ne.s32.totalorder %s57, %s59
      %p63 = scmp.eq.s32.totalorder %s9, 0
      %p64 = por %p62, %p63
      %p65 = scmp.ne.s32.totalorder %s57, %s59
      %p66 = scmp.eq.s32.totalorder %s14, 1
      %p67 = por %p65, %p66
      %p68 = scmp.ne.s32.totalorder %s59, %s60
      %p69 = scmp.eq.s32.totalorder %s14, 0
      %p70 = por %p68, %p69
      %p71 = scmp.ne.s32.totalorder %s59, %s60
      %p72 = scmp.eq.s32.totalorder %s15, 1
      %p73 = por %p71, %p72
      %p75 = scmp.ne.s32.totalorder %s60, %s74
      %p76 = scmp.eq.s32.totalorder %s15, 0
      %p77 = por %p75, %p76
      %s79 = sadd.s32 %s78, 1
      %p82 = scmp.eq.s32.totalorder %s9, 1
      %p83 = scmp.ne.s32.totalorder %s78, %s80
      %p84 = scmp.eq.s32.totalorder %s9, 0
      %p85 = por %p83, %p84
      %p86 = scmp.ne.s32.totalorder %s78, %s80
      %p87 = scmp.eq.s32.totalorder %s14, 1
      %p88 = por %p86, %p87
      %p89 = scmp.ne.s32.totalorder %s80, %s81
      %p90 = scmp.eq.s32.totalorder %s14, 0
      %p91 = por %p89, %p90
      %p92 = scmp.ne.s32.totalorder %s80, %s81
      %p93 = scmp.eq.s32.totalorder %s15, 1
      %p94 = por %p92, %p93
      %p96 = scmp.ne.s32.totalorder %s81, %s95
      %p97 = scmp.eq.s32.totalorder %s15, 0
      %p98 = por %p96, %p97
      %s99 = ssub.s32 %s16, %s28
      %s100 = ssub.s32 %s17, %s24
      %s101 = sor.u32 %s99, %s100
      %p102 = scmp.eq.s32.totalorder %s101, 0
      %s104 = sadd.s32 %s103, 1
      %s105 = scalar_select %p102, %s103, %s104
      %p108 = pneg %p102
      %p109 = scmp.eq.s32.totalorder %s9, 1
      %p110 = por %p108, %p109
      %p111 = scmp.ne.s32.totalorder %s103, %s106
      %p112 = scmp.eq.s32.totalorder %s9, 0
      %p113 = por %p111, %p112
      %p114 = scmp.ne.s32.totalorder %s103, %s106
      %p115 = scmp.eq.s32.totalorder %s14, 1
      %p116 = por %p114, %p115
      %p117 = scmp.ne.s32.totalorder %s106, %s107
      %p118 = scmp.eq.s32.totalorder %s14, 0
      %p119 = por %p117, %p118
      %p120 = scmp.ne.s32.totalorder %s106, %s107
      %p121 = scmp.eq.s32.totalorder %s15, 1
      %p122 = por %p120, %p121
      %p124 = scmp.ne.s32.totalorder %s107, %s123
      %p125 = scmp.eq.s32.totalorder %s15, 0
      %p126 = por %p124, %p125
      %p127 = scmp.le.s32.totalorder 1, %s9
      %p128 = scmp.lt.s32.totalorder %s9, 3
      %p129 = pnand %p127, %p128
      %p130 = pneg %p129
      // Predicated region
      $region9: #{tpu_custom_call.1} parent=5 // pred_check
        _
      $region10: #{tpu_custom_call.1} parent=5 // pred_check_branch
        %132 = sbr.rel (%p129) target = $region12
      $region11: #{tpu_custom_call.1} parent=5 // pred_region
        %s133 = ssub.s32 %s9, 1
        // Predicated region
        $region13: #{tpu_custom_call.1} parent=11 // pred_check
          %p134 = pneg %p70
        $region14: #{tpu_custom_call.1} parent=11 // pred_check_branch
          %136 = sbr.rel (%p134) target = $region16
        $region15: #{tpu_custom_call.1} parent=11 // pred_region
          _
        $region16: #{tpu_custom_call.1} parent=11 // pred_fallthru
          _
        // Predicated region
        $region17: #{tpu_custom_call.1} parent=11 // pred_check
          %p137 = pneg %p91
        $region18: #{tpu_custom_call.1} parent=11 // pred_check_branch
          %139 = sbr.rel (%p137) target = $region20
        $region19: #{tpu_custom_call.1} parent=11 // pred_region
          _
        $region20: #{tpu_custom_call.1} parent=11 // pred_fallthru
          _
      $region12: #{tpu_custom_call.1} parent=5 // pred_fallthru
        _
      %p140 = scmp.lt.s32.totalorder %s9, 2
      // Predicated region
      $region21: #{tpu_custom_call.1} parent=5 // pred_check
        %p141 = pneg %p140
      $region22: #{tpu_custom_call.1} parent=5 // pred_check_branch
        %143 = sbr.rel (%p141) target = $region24
      $region23: #{tpu_custom_call.1} parent=5 // pred_region
        // Predicated region
        $region25: #{tpu_custom_call.1} parent=23 // pred_check
          %p144 = pneg %p43
        $region26: #{tpu_custom_call.1} parent=23 // pred_check_branch
          %146 = sbr.rel (%p144) target = $region28
        $region27: #{tpu_custom_call.1} parent=23 // pred_region
          %s147 = sand.u32 %s33, 1
          %s148 = sand.u32 %s33, 1
          %s149 = smul.addr %s148, 320
          %s150 = scalar_lea.vmem [#allocation2], %s149
          %s151 = smul.u32 10, %s17
          %s152 = ssub.s32 1, %s151
          %s153 = smul.u32 512, %s152
          %p154 = scmp.ne.s32.totalorder 0, %s153
          %s155 = smul.addr %s16, 4
          %s156 = sadd.s32 %s151, %s155
          %s157 = smul.addr %s156, 8
          %s158 = scalar_lea.vmem %s0, %s157
          %s159 = smul.u32 %s152, 8
          // Predicated region
          $region29: #{tpu_custom_call.1} parent=27 // pred_check
            %p160 = pneg %p154
          $region30: #{tpu_custom_call.1} parent=27 // pred_check_branch
            %162 = sbr.rel (%p160) target = $region32
          $region31: #{tpu_custom_call.1} parent=27 // pred_region
            %p163 = scmp.lt.u32.totalorder %s159, 8
            %p164 = pneg %p163
            // Predicated region
            $region33: #{tpu_custom_call.1} parent=31 // pred_check
              _
            $region34: #{tpu_custom_call.1} parent=31 // pred_check_branch
              %166 = sbr.rel (%p163) target = $region36
            $region35: #{tpu_custom_call.1} parent=31 // pred_region
              %s188 = sand.u32 %s159, 7
              %p189 = scmp.eq.s32.totalorder %s188, 0
              // Predicated region
              $region48: #{tpu_custom_call.1} parent=35 // pred_check
                %p190 = pneg %p189
              $region49: #{tpu_custom_call.1} parent=35 // pred_check_branch
                %192 = sbr.rel (%p190) target = $region51
              $region50: #{tpu_custom_call.1} parent=35 // pred_region
                %s193 = sshrl.u32 %s159, 3
                %s194 = sshrl.u32 %s193, 4
                // While loop
                $region52: #{tpu_custom_call.1} parent=50 // loop_pre_header
                  _
                $region53: #{tpu_custom_call.1} parent=50 // loop_header
                  %s198 = sphi 0, %s200
                  %p199 = scmp.ge.s32.totalorder %s198, %s194
                  %s203 = sphi 0, %s336
                  %s204 = sphi %s158, %s339
                  %s205 = sphi %s150, %s340
                $region54: #{tpu_custom_call.1} parent=50 // loop_header_branch
                  %202 = sbr.rel (%p199) target = $region58
                $region55: #{tpu_custom_call.1} parent=50 // loop_body
                  %v206 = vld [vmem:[%s204] sm:$0xff]
                  %207 = vst [vmem:[%s205] sm:$0xff] %v206
                  %v208 = vld [vmem:[%s204 + $0x8] sm:$0xff]
                  %209 = vst [vmem:[%s205 + $0x8] sm:$0xff] %v208
                  %v210 = vld [vmem:[%s204 + $0x10] sm:$0xff]
                  %211 = vst [vmem:[%s205 + $0x10] sm:$0xff] %v210
                  %v212 = vld [vmem:[%s204 + $0x18] sm:$0xff]
                  %213 = vst [vmem:[%s205 + $0x18] sm:$0xff] %v212
                  %v214 = vld [vmem:[%s204 + $0x20] sm:$0xff]
                  %215 = vst [vmem:[%s205 + $0x20] sm:$0xff] %v214
                  %v216 = vld [vmem:[%s204 + $0x28] sm:$0xff]
                  %217 = vst [vmem:[%s205 + $0x28] sm:$0xff] %v216
                  %v218 = vld [vmem:[%s204 + $0x30] sm:$0xff]
                  %219 = vst [vmem:[%s205 + $0x30] sm:$0xff] %v218
                  %v220 = vld [vmem:[%s204 + $0x38] sm:$0xff]
                  %221 = vst [vmem:[%s205 + $0x38] sm:$0xff] %v220
                  %v222 = vld [vmem:[%s204 + $0x40] sm:$0xff]
                  %223 = vst [vmem:[%s205 + $0x40] sm:$0xff] %v222
                  %v224 = vld [vmem:[%s204 + $0x48] sm:$0xff]
                  %225 = vst [vmem:[%s205 + $0x48] sm:$0xff] %v224
                  %v226 = vld [vmem:[%s204 + $0x50] sm:$0xff]
                  %227 = vst [vmem:[%s205 + $0x50] sm:$0xff] %v226
                  %v228 = vld [vmem:[%s204 + $0x58] sm:$0xff]
                  %229 = vst [vmem:[%s205 + $0x58] sm:$0xff] %v228
                  %v230 = vld [vmem:[%s204 + $0x60] sm:$0xff]
                  %231 = vst [vmem:[%s205 + $0x60] sm:$0xff] %v230
                  %v232 = vld [vmem:[%s204 + $0x68] sm:$0xff]
                  %233 = vst [vmem:[%s205 + $0x68] sm:$0xff] %v232
                  %v234 = vld [vmem:[%s204 + $0x70] sm:$0xff]
                  %235 = vst [vmem:[%s205 + $0x70] sm:$0xff] %v234
                  %v236 = vld [vmem:[%s204 + $0x78] sm:$0xff]
                  %237 = vst [vmem:[%s205 + $0x78] sm:$0xff] %v236
                  %v238 = vld [vmem:[%s204 + $0x8] sm:$0xff]
                  %239 = vst [vmem:[%s205 + $0x50] sm:$0xff] %v238
                  %v240 = vld [vmem:[%s204 + $0x10] sm:$0xff]
                  %241 = vst [vmem:[%s205 + $0x58] sm:$0xff] %v240
                  %v242 = vld [vmem:[%s204 + $0x18] sm:$0xff]
                  %243 = vst [vmem:[%s205 + $0x60] sm:$0xff] %v242
                  %v244 = vld [vmem:[%s204 + $0x20] sm:$0xff]
                  %245 = vst [vmem:[%s205 + $0x68] sm:$0xff] %v244
                  %v246 = vld [vmem:[%s204 + $0x28] sm:$0xff]
                  %247 = vst [vmem:[%s205 + $0x70] sm:$0xff] %v246
                  %v248 = vld [vmem:[%s204 + $0x30] sm:$0xff]
                  %249 = vst [vmem:[%s205 + $0x78] sm:$0xff] %v248
                  %v250 = vld [vmem:[%s204 + $0x38] sm:$0xff]
                  %251 = vst [vmem:[%s205 + $0x80] sm:$0xff] %v250
                  %v252 = vld [vmem:[%s204 + $0x40] sm:$0xff]
                  %253 = vst [vmem:[%s205 + $0x88] sm:$0xff] %v252
                  %v254 = vld [vmem:[%s204 + $0x48] sm:$0xff]
                  %255 = vst [vmem:[%s205 + $0x90] sm:$0xff] %v254
                  %v256 = vld [vmem:[%s204 + $0x50] sm:$0xff]
                  %257 = vst [vmem:[%s205 + $0x98] sm:$0xff] %v256
                  %v258 = vld [vmem:[%s204 + $0x58] sm:$0xff]
                  %259 = vst [vmem:[%s205 + $0xa0] sm:$0xff] %v258
                  %v260 = vld [vmem:[%s204 + $0x60] sm:$0xff]
                  %261 = vst [vmem:[%s205 + $0xa8] sm:$0xff] %v260
                  %v262 = vld [vmem:[%s204 + $0x68] sm:$0xff]
                  %263 = vst [vmem:[%s205 + $0xb0] sm:$0xff] %v262
                  %v264 = vld [vmem:[%s204 + $0x70] sm:$0xff]
                  %265 = vst [vmem:[%s205 + $0xb8] sm:$0xff] %v264
                  %v266 = vld [vmem:[%s204 + $0x78] sm:$0xff]
                  %267 = vst [vmem:[%s205 + $0xc0] sm:$0xff] %v266
                  %v268 = vld [vmem:[%s204 + $0x80] sm:$0xff]
                  %269 = vst [vmem:[%s205 + $0xc8] sm:$0xff] %v268
                  %v270 = vld [vmem:[%s204 + $0x10] sm:$0xff]
                  %271 = vst [vmem:[%s205 + $0xa0] sm:$0xff] %v270
                  %v272 = vld [vmem:[%s204 + $0x18] sm:$0xff]
                  %273 = vst [vmem:[%s205 + $0xa8] sm:$0xff] %v272
                  %v274 = vld [vmem:[%s204 + $0x20] sm:$0xff]
                  %275 = vst [vmem:[%s205 + $0xb0] sm:$0xff] %v274
                  %v276 = vld [vmem:[%s204 + $0x28] sm:$0xff]
                  %277 = vst [vmem:[%s205 + $0xb8] sm:$0xff] %v276
                  %v278 = vld [vmem:[%s204 + $0x30] sm:$0xff]
                  %279 = vst [vmem:[%s205 + $0xc0] sm:$0xff] %v278
                  %v280 = vld [vmem:[%s204 + $0x38] sm:$0xff]
                  %281 = vst [vmem:[%s205 + $0xc8] sm:$0xff] %v280
                  %v282 = vld [vmem:[%s204 + $0x40] sm:$0xff]
                  %283 = vst [vmem:[%s205 + $0xd0] sm:$0xff] %v282
                  %v284 = vld [vmem:[%s204 + $0x48] sm:$0xff]
                  %285 = vst [vmem:[%s205 + $0xd8] sm:$0xff] %v284
                  %v286 = vld [vmem:[%s204 + $0x50] sm:$0xff]
                  %287 = vst [vmem:[%s205 + $0xe0] sm:$0xff] %v286
                  %v288 = vld [vmem:[%s204 + $0x58] sm:$0xff]
                  %289 = vst [vmem:[%s205 + $0xe8] sm:$0xff] %v288
                  %v290 = vld [vmem:[%s204 + $0x60] sm:$0xff]
                  %291 = vst [vmem:[%s205 + $0xf0] sm:$0xff] %v290
                  %v292 = vld [vmem:[%s204 + $0x68] sm:$0xff]
                  %293 = vst [vmem:[%s205 + $0xf8] sm:$0xff] %v292
                  %v294 = vld [vmem:[%s204 + $0x70] sm:$0xff]
                  %295 = vst [vmem:[%s205 + $0x100] sm:$0xff] %v294
                  %v296 = vld [vmem:[%s204 + $0x78] sm:$0xff]
                  %297 = vst [vmem:[%s205 + $0x108] sm:$0xff] %v296
                  %v298 = vld [vmem:[%s204 + $0x80] sm:$0xff]
                  %299 = vst [vmem:[%s205 + $0x110] sm:$0xff] %v298
                  %v300 = vld [vmem:[%s204 + $0x88] sm:$0xff]
                  %301 = vst [vmem:[%s205 + $0x118] sm:$0xff] %v300
                  %v302 = vld [vmem:[%s204 + $0x18] sm:$0xff]
                  %303 = vst [vmem:[%s205 + $0xf0] sm:$0xff] %v302
                  %v304 = vld [vmem:[%s204 + $0x20] sm:$0xff]
                  %305 = vst [vmem:[%s205 + $0xf8] sm:$0xff] %v304
                  %v306 = vld [vmem:[%s204 + $0x28] sm:$0xff]
                  %307 = vst [vmem:[%s205 + $0x100] sm:$0xff] %v306
                  %v308 = vld [vmem:[%s204 + $0x30] sm:$0xff]
                  %309 = vst [vmem:[%s205 + $0x108] sm:$0xff] %v308
                  %v310 = vld [vmem:[%s204 + $0x38] sm:$0xff]
                  %311 = vst [vmem:[%s205 + $0x110] sm:$0xff] %v310
                  %v312 = vld [vmem:[%s204 + $0x40] sm:$0xff]
                  %313 = vst [vmem:[%s205 + $0x118] sm:$0xff] %v312
                  %v314 = vld [vmem:[%s204 + $0x48] sm:$0xff]
                  %315 = vst [vmem:[%s205 + $0x120] sm:$0xff] %v314
                  %v316 = vld [vmem:[%s204 + $0x50] sm:$0xff]
                  %317 = vst [vmem:[%s205 + $0x128] sm:$0xff] %v316
                  %v318 = vld [vmem:[%s204 + $0x58] sm:$0xff]
                  %319 = vst [vmem:[%s205 + $0x130] sm:$0xff] %v318
                  %v320 = vld [vmem:[%s204 + $0x60] sm:$0xff]
                  %321 = vst [vmem:[%s205 + $0x138] sm:$0xff] %v320
                  %v322 = vld [vmem:[%s204 + $0x68] sm:$0xff]
                  %323 = vst [vmem:[%s205 + $0x140] sm:$0xff] %v322
                  %v324 = vld [vmem:[%s204 + $0x70] sm:$0xff]
                  %325 = vst [vmem:[%s205 + $0x148] sm:$0xff] %v324
                  %v326 = vld [vmem:[%s204 + $0x78] sm:$0xff]
                  %327 = vst [vmem:[%s205 + $0x150] sm:$0xff] %v326
                  %v328 = vld [vmem:[%s204 + $0x80] sm:$0xff]
                  %329 = vst [vmem:[%s205 + $0x158] sm:$0xff] %v328
                  %v330 = vld [vmem:[%s204 + $0x88] sm:$0xff]
                  %331 = vst [vmem:[%s205 + $0x160] sm:$0xff] %v330
                  %v332 = vld [vmem:[%s204 + $0x90] sm:$0xff]
                  %333 = vst [vmem:[%s205 + $0x168] sm:$0xff] %v332
                  %s334 = sadd.s32 1, %s203
                  %p335 = scmp.ge.s32.totalorder %s334, %s194
                  %s336 = scalar_select %p335, 0, %s334
                  %s337 = smul.u32 %s336, 128
                  %s338 = smul.u32 %s336, 128
                  %s339 = scalar_lea.vmem %s158, %s337
                  %s340 = scalar_lea.vmem %s150, %s338 [#allocation2]
                $region56: #{tpu_custom_call.1} parent=50 // loop_footer
                  %s200 = sadd.s32 %s198, 1
                $region57: #{tpu_custom_call.1} parent=50 // loop_footer_branch
                  %197 = sbr.rel target = $region53
                $region58: #{tpu_custom_call.1} parent=50 // loop_exit
                  _
                %s341 = sshrl.u32 %s193, 4
                %s342 = sand.u32 %s193, 15
                %s343 = smul.u32 %s341, 16
                %s344 = smul.u32 128, %s343
                %s345 = sshra.s32 %s344, 4
                %s346 = scalar_lea.vmem %s158, %s345
                %s347 = smul.u32 128, %s343
                %s348 = sshra.s32 %s347, 4
                %s349 = scalar_lea.vmem %s150, %s348 [#allocation2]
                // While loop
                $region59: #{tpu_custom_call.1} parent=50 // loop_pre_header
                  _
                $region60: #{tpu_custom_call.1} parent=50 // loop_header
                  %s353 = sphi 0, %s355
                  %p354 = scmp.ge.s32.totalorder %s353, %s342
                  %s358 = sphi 0, %s371
                  %s359 = sphi %s346, %s374
                  %s360 = sphi %s349, %s375
                $region61: #{tpu_custom_call.1} parent=50 // loop_header_branch
                  %357 = sbr.rel (%p354) target = $region65
                $region62: #{tpu_custom_call.1} parent=50 // loop_body
                  %v361 = vld [vmem:[%s359] sm:$0xff]
                  %362 = vst [vmem:[%s360] sm:$0xff] %v361
                  %v363 = vld [vmem:[%s359 + $0x8] sm:$0xff]
                  %364 = vst [vmem:[%s360 + $0x50] sm:$0xff] %v363
                  %v365 = vld [vmem:[%s359 + $0x10] sm:$0xff]
                  %366 = vst [vmem:[%s360 + $0xa0] sm:$0xff] %v365
                  %v367 = vld [vmem:[%s359 + $0x18] sm:$0xff]
                  %368 = vst [vmem:[%s360 + $0xf0] sm:$0xff] %v367
                  %s369 = sadd.s32 1, %s358
                  %p370 = scmp.ge.s32.totalorder %s369, %s342
                  %s371 = scalar_select %p370, 0, %s369
                  %s372 = smul.u32 %s371, 8
                  %s373 = smul.u32 %s371, 8
                  %s374 = scalar_lea.vmem %s346, %s372
                  %s375 = scalar_lea.vmem %s349, %s373 [#allocation2]
                $region63: #{tpu_custom_call.1} parent=50 // loop_footer
                  %s355 = sadd.s32 %s353, 1
                $region64: #{tpu_custom_call.1} parent=50 // loop_footer_branch
                  %352 = sbr.rel target = $region60
                $region65: #{tpu_custom_call.1} parent=50 // loop_exit
                  _
              $region51: #{tpu_custom_call.1} parent=35 // pred_fallthru
                _
              %p376 = pneg %p189
              // Predicated region
              $region66: #{tpu_custom_call.1} parent=35 // pred_check
                _
              $region67: #{tpu_custom_call.1} parent=35 // pred_check_branch
                %378 = sbr.rel (%p189) target = $region69
              $region68: #{tpu_custom_call.1} parent=35 // pred_region
                %s379 = sand.u32 %s159, 7
                %s380 = ssub.s32 %s159, %s379
                %s381 = scalar_lea.vmem %s158, %s380
                %s382 = ssub.s32 %s159, %s379
                %s383 = scalar_lea.vmem %s150, %s382 [#allocation2]
                %s384 = sshrl.u32 %s159, 3
                %s385 = sshrl.u32 %s384, 4
                // While loop
                $region70: #{tpu_custom_call.1} parent=68 // loop_pre_header
                  _
                $region71: #{tpu_custom_call.1} parent=68 // loop_header
                  %s389 = sphi 0, %s391
                  %p390 = scmp.ge.s32.totalorder %s389, %s385
                  %s394 = sphi 0, %s527
                  %s395 = sphi %s158, %s530
                  %s396 = sphi %s150, %s531
                $region72: #{tpu_custom_call.1} parent=68 // loop_header_branch
                  %393 = sbr.rel (%p390) target = $region76
                $region73: #{tpu_custom_call.1} parent=68 // loop_body
                  %v397 = vld [vmem:[%s395] sm:$0xff]
                  %398 = vst [vmem:[%s396] sm:$0xff] %v397
                  %v399 = vld [vmem:[%s395 + $0x8] sm:$0xff]
                  %400 = vst [vmem:[%s396 + $0x8] sm:$0xff] %v399
                  %v401 = vld [vmem:[%s395 + $0x10] sm:$0xff]
                  %402 = vst [vmem:[%s396 + $0x10] sm:$0xff] %v401
                  %v403 = vld [vmem:[%s395 + $0x18] sm:$0xff]
                  %404 = vst [vmem:[%s396 + $0x18] sm:$0xff] %v403
                  %v405 = vld [vmem:[%s395 + $0x20] sm:$0xff]
                  %406 = vst [vmem:[%s396 + $0x20] sm:$0xff] %v405
                  %v407 = vld [vmem:[%s395 + $0x28] sm:$0xff]
                  %408 = vst [vmem:[%s396 + $0x28] sm:$0xff] %v407
                  %v409 = vld [vmem:[%s395 + $0x30] sm:$0xff]
                  %410 = vst [vmem:[%s396 + $0x30] sm:$0xff] %v409
                  %v411 = vld [vmem:[%s395 + $0x38] sm:$0xff]
                  %412 = vst [vmem:[%s396 + $0x38] sm:$0xff] %v411
                  %v413 = vld [vmem:[%s395 + $0x40] sm:$0xff]
                  %414 = vst [vmem:[%s396 + $0x40] sm:$0xff] %v413
                  %v415 = vld [vmem:[%s395 + $0x48] sm:$0xff]
                  %416 = vst [vmem:[%s396 + $0x48] sm:$0xff] %v415
                  %v417 = vld [vmem:[%s395 + $0x50] sm:$0xff]
                  %418 = vst [vmem:[%s396 + $0x50] sm:$0xff] %v417
                  %v419 = vld [vmem:[%s395 + $0x58] sm:$0xff]
                  %420 = vst [vmem:[%s396 + $0x58] sm:$0xff] %v419
                  %v421 = vld [vmem:[%s395 + $0x60] sm:$0xff]
                  %422 = vst [vmem:[%s396 + $0x60] sm:$0xff] %v421
                  %v423 = vld [vmem:[%s395 + $0x68] sm:$0xff]
                  %424 = vst [vmem:[%s396 + $0x68] sm:$0xff] %v423
                  %v425 = vld [vmem:[%s395 + $0x70] sm:$0xff]
                  %426 = vst [vmem:[%s396 + $0x70] sm:$0xff] %v425
                  %v427 = vld [vmem:[%s395 + $0x78] sm:$0xff]
                  %428 = vst [vmem:[%s396 + $0x78] sm:$0xff] %v427
                  %v429 = vld [vmem:[%s395 + $0x8] sm:$0xff]
                  %430 = vst [vmem:[%s396 + $0x50] sm:$0xff] %v429
                  %v431 = vld [vmem:[%s395 + $0x10] sm:$0xff]
                  %432 = vst [vmem:[%s396 + $0x58] sm:$0xff] %v431
                  %v433 = vld [vmem:[%s395 + $0x18] sm:$0xff]
                  %434 = vst [vmem:[%s396 + $0x60] sm:$0xff] %v433
                  %v435 = vld [vmem:[%s395 + $0x20] sm:$0xff]
                  %436 = vst [vmem:[%s396 + $0x68] sm:$0xff] %v435
                  %v437 = vld [vmem:[%s395 + $0x28] sm:$0xff]
                  %438 = vst [vmem:[%s396 + $0x70] sm:$0xff] %v437
                  %v439 = vld [vmem:[%s395 + $0x30] sm:$0xff]
                  %440 = vst [vmem:[%s396 + $0x78] sm:$0xff] %v439
                  %v441 = vld [vmem:[%s395 + $0x38] sm:$0xff]
                  %442 = vst [vmem:[%s396 + $0x80] sm:$0xff] %v441
                  %v443 = vld [vmem:[%s395 + $0x40] sm:$0xff]
                  %444 = vst [vmem:[%s396 + $0x88] sm:$0xff] %v443
                  %v445 = vld [vmem:[%s395 + $0x48] sm:$0xff]
                  %446 = vst [vmem:[%s396 + $0x90] sm:$0xff] %v445
                  %v447 = vld [vmem:[%s395 + $0x50] sm:$0xff]
                  %448 = vst [vmem:[%s396 + $0x98] sm:$0xff] %v447
                  %v449 = vld [vmem:[%s395 + $0x58] sm:$0xff]
                  %450 = vst [vmem:[%s396 + $0xa0] sm:$0xff] %v449
                  %v451 = vld [vmem:[%s395 + $0x60] sm:$0xff]
                  %452 = vst [vmem:[%s396 + $0xa8] sm:$0xff] %v451
                  %v453 = vld [vmem:[%s395 + $0x68] sm:$0xff]
                  %454 = vst [vmem:[%s396 + $0xb0] sm:$0xff] %v453
                  %v455 = vld [vmem:[%s395 + $0x70] sm:$0xff]
                  %456 = vst [vmem:[%s396 + $0xb8] sm:$0xff] %v455
                  %v457 = vld [vmem:[%s395 + $0x78] sm:$0xff]
                  %458 = vst [vmem:[%s396 + $0xc0] sm:$0xff] %v457
                  %v459 = vld [vmem:[%s395 + $0x80] sm:$0xff]
                  %460 = vst [vmem:[%s396 + $0xc8] sm:$0xff] %v459
                  %v461 = vld [vmem:[%s395 + $0x10] sm:$0xff]
                  %462 = vst [vmem:[%s396 + $0xa0] sm:$0xff] %v461
                  %v463 = vld [vmem:[%s395 + $0x18] sm:$0xff]
                  %464 = vst [vmem:[%s396 + $0xa8] sm:$0xff] %v463
                  %v465 = vld [vmem:[%s395 + $0x20] sm:$0xff]
                  %466 = vst [vmem:[%s396 + $0xb0] sm:$0xff] %v465
                  %v467 = vld [vmem:[%s395 + $0x28] sm:$0xff]
                  %468 = vst [vmem:[%s396 + $0xb8] sm:$0xff] %v467
                  %v469 = vld [vmem:[%s395 + $0x30] sm:$0xff]
                  %470 = vst [vmem:[%s396 + $0xc0] sm:$0xff] %v469
                  %v471 = vld [vmem:[%s395 + $0x38] sm:$0xff]
                  %472 = vst [vmem:[%s396 + $0xc8] sm:$0xff] %v471
                  %v473 = vld [vmem:[%s395 + $0x40] sm:$0xff]
                  %474 = vst [vmem:[%s396 + $0xd0] sm:$0xff] %v473
                  %v475 = vld [vmem:[%s395 + $0x48] sm:$0xff]
                  %476 = vst [vmem:[%s396 + $0xd8] sm:$0xff] %v475
                  %v477 = vld [vmem:[%s395 + $0x50] sm:$0xff]
                  %478 = vst [vmem:[%s396 + $0xe0] sm:$0xff] %v477
                  %v479 = vld [vmem:[%s395 + $0x58] sm:$0xff]
                  %480 = vst [vmem:[%s396 + $0xe8] sm:$0xff] %v479
                  %v481 = vld [vmem:[%s395 + $0x60] sm:$0xff]
                  %482 = vst [vmem:[%s396 + $0xf0] sm:$0xff] %v481
                  %v483 = vld [vmem:[%s395 + $0x68] sm:$0xff]
                  %484 = vst [vmem:[%s396 + $0xf8] sm:$0xff] %v483
                  %v485 = vld [vmem:[%s395 + $0x70] sm:$0xff]
                  %486 = vst [vmem:[%s396 + $0x100] sm:$0xff] %v485
                  %v487 = vld [vmem:[%s395 + $0x78] sm:$0xff]
                  %488 = vst [vmem:[%s396 + $0x108] sm:$0xff] %v487
                  %v489 = vld [vmem:[%s395 + $0x80] sm:$0xff]
                  %490 = vst [vmem:[%s396 + $0x110] sm:$0xff] %v489
                  %v491 = vld [vmem:[%s395 + $0x88] sm:$0xff]
                  %492 = vst [vmem:[%s396 + $0x118] sm:$0xff] %v491
                  %v493 = vld [vmem:[%s395 + $0x18] sm:$0xff]
                  %494 = vst [vmem:[%s396 + $0xf0] sm:$0xff] %v493
                  %v495 = vld [vmem:[%s395 + $0x20] sm:$0xff]
                  %496 = vst [vmem:[%s396 + $0xf8] sm:$0xff] %v495
                  %v497 = vld [vmem:[%s395 + $0x28] sm:$0xff]
                  %498 = vst [vmem:[%s396 + $0x100] sm:$0xff] %v497
                  %v499 = vld [vmem:[%s395 + $0x30] sm:$0xff]
                  %500 = vst [vmem:[%s396 + $0x108] sm:$0xff] %v499
                  %v501 = vld [vmem:[%s395 + $0x38] sm:$0xff]
                  %502 = vst [vmem:[%s396 + $0x110] sm:$0xff] %v501
                  %v503 = vld [vmem:[%s395 + $0x40] sm:$0xff]
                  %504 = vst [vmem:[%s396 + $0x118] sm:$0xff] %v503
                  %v505 = vld [vmem:[%s395 + $0x48] sm:$0xff]
                  %506 = vst [vmem:[%s396 + $0x120] sm:$0xff] %v505
                  %v507 = vld [vmem:[%s395 + $0x50] sm:$0xff]
                  %508 = vst [vmem:[%s396 + $0x128] sm:$0xff] %v507
                  %v509 = vld [vmem:[%s395 + $0x58] sm:$0xff]
                  %510 = vst [vmem:[%s396 + $0x130] sm:$0xff] %v509
                  %v511 = vld [vmem:[%s395 + $0x60] sm:$0xff]
                  %512 = vst [vmem:[%s396 + $0x138] sm:$0xff] %v511
                  %v513 = vld [vmem:[%s395 + $0x68] sm:$0xff]
                  %514 = vst [vmem:[%s396 + $0x140] sm:$0xff] %v513
                  %v515 = vld [vmem:[%s395 + $0x70] sm:$0xff]
                  %516 = vst [vmem:[%s396 + $0x148] sm:$0xff] %v515
                  %v517 = vld [vmem:[%s395 + $0x78] sm:$0xff]
                  %518 = vst [vmem:[%s396 + $0x150] sm:$0xff] %v517
                  %v519 = vld [vmem:[%s395 + $0x80] sm:$0xff]
                  %520 = vst [vmem:[%s396 + $0x158] sm:$0xff] %v519
                  %v521 = vld [vmem:[%s395 + $0x88] sm:$0xff]
                  %522 = vst [vmem:[%s396 + $0x160] sm:$0xff] %v521
                  %v523 = vld [vmem:[%s395 + $0x90] sm:$0xff]
                  %524 = vst [vmem:[%s396 + $0x168] sm:$0xff] %v523
                  %s525 = sadd.s32 1, %s394
                  %p526 = scmp.ge.s32.totalorder %s525, %s385
                  %s527 = scalar_select %p526, 0, %s525
                  %s528 = smul.u32 %s527, 128
                  %s529 = smul.u32 %s527, 128
                  %s530 = scalar_lea.vmem %s158, %s528
                  %s531 = scalar_lea.vmem %s150, %s529 [#allocation2]
                $region74: #{tpu_custom_call.1} parent=68 // loop_footer
                  %s391 = sadd.s32 %s389, 1
                $region75: #{tpu_custom_call.1} parent=68 // loop_footer_branch
                  %388 = sbr.rel target = $region71
                $region76: #{tpu_custom_call.1} parent=68 // loop_exit
                  _
                %s532 = sshrl.u32 %s384, 4
                %s533 = sand.u32 %s384, 15
                %s534 = smul.u32 %s532, 16
                %s535 = smul.u32 128, %s534
                %s536 = sshra.s32 %s535, 4
                %s537 = scalar_lea.vmem %s158, %s536
                %s538 = smul.u32 128, %s534
                %s539 = sshra.s32 %s538, 4
                %s540 = scalar_lea.vmem %s150, %s539 [#allocation2]
                // While loop
                $region77: #{tpu_custom_call.1} parent=68 // loop_pre_header
                  _
                $region78: #{tpu_custom_call.1} parent=68 // loop_header
                  %s544 = sphi 0, %s546
                  %p545 = scmp.ge.s32.totalorder %s544, %s533
                  %s549 = sphi 0, %s562
                  %s550 = sphi %s537, %s565
                  %s551 = sphi %s540, %s566
                $region79: #{tpu_custom_call.1} parent=68 // loop_header_branch
                  %548 = sbr.rel (%p545) target = $region83
                $region80: #{tpu_custom_call.1} parent=68 // loop_body
                  %v552 = vld [vmem:[%s550] sm:$0xff]
                  %553 = vst [vmem:[%s551] sm:$0xff] %v552
                  %v554 = vld [vmem:[%s550 + $0x8] sm:$0xff]
                  %555 = vst [vmem:[%s551 + $0x50] sm:$0xff] %v554
                  %v556 = vld [vmem:[%s550 + $0x10] sm:$0xff]
                  %557 = vst [vmem:[%s551 + $0xa0] sm:$0xff] %v556
                  %v558 = vld [vmem:[%s550 + $0x18] sm:$0xff]
                  %559 = vst [vmem:[%s551 + $0xf0] sm:$0xff] %v558
                  %s560 = sadd.s32 1, %s549
                  %p561 = scmp.ge.s32.totalorder %s560, %s533
                  %s562 = scalar_select %p561, 0, %s560
                  %s563 = smul.u32 %s562, 8
                  %s564 = smul.u32 %s562, 8
                  %s565 = scalar_lea.vmem %s537, %s563
                  %s566 = scalar_lea.vmem %s540, %s564 [#allocation2]
                $region81: #{tpu_custom_call.1} parent=68 // loop_footer
                  %s546 = sadd.s32 %s544, 1
                $region82: #{tpu_custom_call.1} parent=68 // loop_footer_branch
                  %543 = sbr.rel target = $region78
                $region83: #{tpu_custom_call.1} parent=68 // loop_exit
                  _
                %s567 = sshll.u32 1, %s379
                %s568 = ssub.s32 %s567, 1
                loop: start=0, step=1, limit=1
                $region84: #{tpu_custom_call.1} parent=68 // loop_pre_header
                  _
                $region85: #{tpu_custom_call.1} parent=68 // loop_header
                  %s570 = sphi 0, %s574
                  %p571 = scmp.ge.s32.totalorder %s570, 1
                  %s575 = sphi %s381, %s381
                  %s576 = sphi %s383, %s383
                $region86: #{tpu_custom_call.1} parent=68 // loop_header_branch
                  %573 = sbr.rel (%p571) target = $region90
                $region87: #{tpu_custom_call.1} parent=68 // loop_body
                  %v577 = vld [vmem:[%s575] sm:%s568]
                  %578 = vst [vmem:[%s576] sm:%s568] %v577
                  %v579 = vld [vmem:[%s575 + $0x8] sm:%s568]
                  %580 = vst [vmem:[%s576 + $0x50] sm:%s568] %v579
                  %v581 = vld [vmem:[%s575 + $0x10] sm:%s568]
                  %582 = vst [vmem:[%s576 + $0xa0] sm:%s568] %v581
                  %v583 = vld [vmem:[%s575 + $0x18] sm:%s568]
                  %584 = vst [vmem:[%s576 + $0xf0] sm:%s568] %v583
                $region88: #{tpu_custom_call.1} parent=68 // loop_footer
                  %s574 = sadd.s32 1, %s570
                $region89: #{tpu_custom_call.1} parent=68 // loop_footer_branch
                  %569 = sbr.rel target = $region85
                $region90: #{tpu_custom_call.1} parent=68 // loop_exit
                  _
              $region69: #{tpu_custom_call.1} parent=35 // pred_fallthru
                _
            $region36: #{tpu_custom_call.1} parent=31 // pred_fallthru
              _
            // Predicated region
            $region37: #{tpu_custom_call.1} parent=31 // pred_check
              %p167 = pneg %p163
            $region38: #{tpu_custom_call.1} parent=31 // pred_check_branch
              %169 = sbr.rel (%p167) target = $region40
            $region39: #{tpu_custom_call.1} parent=31 // pred_region
              %s170 = sshll.u32 1, %s159
              %s171 = ssub.s32 %s170, 1
              loop: start=0, step=1, limit=1
              $region41: #{tpu_custom_call.1} parent=39 // loop_pre_header
                _
              $region42: #{tpu_custom_call.1} parent=39 // loop_header
                %s173 = sphi 0, %s177
                %p174 = scmp.ge.s32.totalorder %s173, 1
                %s178 = sphi %s158, %s158
                %s179 = sphi %s150, %s150
              $region43: #{tpu_custom_call.1} parent=39 // loop_header_branch
                %176 = sbr.rel (%p174) target = $region47
              $region44: #{tpu_custom_call.1} parent=39 // loop_body
                %v180 = vld [vmem:[%s178] sm:%s171]
                %181 = vst [vmem:[%s179] sm:%s171] %v180
                %v182 = vld [vmem:[%s178 + $0x8] sm:%s171]
                %183 = vst [vmem:[%s179 + $0x50] sm:%s171] %v182
                %v184 = vld [vmem:[%s178 + $0x10] sm:%s171]
                %185 = vst [vmem:[%s179 + $0xa0] sm:%s171] %v184
                %v186 = vld [vmem:[%s178 + $0x18] sm:%s171]
                %187 = vst [vmem:[%s179 + $0xf0] sm:%s171] %v186
              $region45: #{tpu_custom_call.1} parent=39 // loop_footer
                %s177 = sadd.s32 1, %s173
              $region46: #{tpu_custom_call.1} parent=39 // loop_footer_branch
                %172 = sbr.rel target = $region42
              $region47: #{tpu_custom_call.1} parent=39 // loop_exit
                _
            $region40: #{tpu_custom_call.1} parent=31 // pred_fallthru
              _
          $region32: #{tpu_custom_call.1} parent=27 // pred_fallthru
            _
          %585 = vnop
        $region28: #{tpu_custom_call.1} parent=23 // pred_fallthru
          _
      $region24: #{tpu_custom_call.1} parent=5 // pred_fallthru
        _
      %p586 = scmp.le.s32.totalorder 1, %s9
      %p587 = scmp.lt.s32.totalorder %s9, 3
      %p588 = pnand %p586, %p587
      %p589 = pneg %p588
      // Predicated region
      $region91: #{tpu_custom_call.1} parent=5 // pred_check
        _
      $region92: #{tpu_custom_call.1} parent=5 // pred_check_branch
        %591 = sbr.rel (%p588) target = $region94
      $region93: #{tpu_custom_call.1} parent=5 // pred_region
        %s592 = ssub.s32 %s9, 1
        %s593 = sand.u32 %s36, 1
        %s594 = sand.u32 %s36, 1
        %s595 = smul.addr %s594, 320
        %s596 = scalar_lea.vmem [#allocation2], %s595
        // Predicated region
        $region95: #{tpu_custom_call.1} parent=93 // pred_check
          %p597 = pneg %p49
        $region96: #{tpu_custom_call.1} parent=93 // pred_check_branch
          %599 = sbr.rel (%p597) target = $region98
        $region97: #{tpu_custom_call.1} parent=93 // pred_region
          _
        $region98: #{tpu_custom_call.1} parent=93 // pred_fallthru
          _
        %s600 = sand.u32 %s36, 1
        %s601 = sand.u32 %s36, 1
        %s602 = smul.addr %s601, 320
        %s603 = scalar_lea.vmem [#allocation2], %s602
        %p604 = pneg %p49
        %p605 = pneg %p46
        %p606 = pneg %p70
        %p607 = pneg %p67
        %p608 = pneg %p91
        %p609 = pneg %p88
        %p610 = pneg %p119
        %p611 = pneg %p116
        %s612 = sand.u32 %s106, 1
        %s613 = sand.u32 %s106, 1
        %s614 = smul.addr %s613, 320
        %s615 = scalar_lea.vmem [#allocation3], %s614
        %s616 = smul.u32 10, %s19
        %s617 = ssub.s32 1, %s616
        %s618 = smul.u32 512, %s617
        %s619 = smul.u32 10, %s19
        %s620 = ssub.s32 1, %s619
        %s621 = smul.u32 512, %s620
        %v622 = vld [vmem:[%s1] sm:$0xff]
        %v623 = vld [vmem:[%s1 + $0x8] sm:$0xff]
        %v624 = vld [vmem:[%s1 + $0x10] sm:$0xff]
        %v625 = vld [vmem:[%s1 + $0x18] sm:$0xff]
        %v626 = vld [vmem:[%s2] sm:$0xff]
        %v627 = vld [vmem:[%s2 + $0x8] sm:$0xff]
        %v628 = vld [vmem:[%s2 + $0x10] sm:$0xff]
        %v629 = vld [vmem:[%s2 + $0x18] sm:$0xff]
        %v630 = vld [vmem:[%s596] sm:$0xff]
        %v631 = vld [vmem:[%s596 + $0x8] sm:$0xff]
        %v632 = vld [vmem:[%s596 + $0x10] sm:$0xff]
        %v633 = vld [vmem:[%s596 + $0x18] sm:$0xff]
        %v634 = vld [vmem:[%s596 + $0x20] sm:$0xff]
        %v635 = vld [vmem:[%s596 + $0x28] sm:$0xff]
        %v636 = vld [vmem:[%s596 + $0x30] sm:$0xff]
        %v637 = vld [vmem:[%s596 + $0x38] sm:$0xff]
        %v638 = vld [vmem:[%s596 + $0x40] sm:$0xff]
        %v639 = vld [vmem:[%s596 + $0x48] sm:$0xff]
        %v640 = vld [vmem:[%s596 + $0x50] sm:$0xff]
        %v641 = vld [vmem:[%s596 + $0x58] sm:$0xff]
        %v642 = vld [vmem:[%s596 + $0x60] sm:$0xff]
        %v643 = vld [vmem:[%s596 + $0x68] sm:$0xff]
        %v644 = vld [vmem:[%s596 + $0x70] sm:$0xff]
        %v645 = vld [vmem:[%s596 + $0x78] sm:$0xff]
        %v646 = vld [vmem:[%s596 + $0x80] sm:$0xff]
        %v647 = vld [vmem:[%s596 + $0x88] sm:$0xff]
        %v648 = vld [vmem:[%s596 + $0x90] sm:$0xff]
        %v649 = vld [vmem:[%s596 + $0x98] sm:$0xff]
        %v650 = vld [vmem:[%s596 + $0xa0] sm:$0xff]
        %v651 = vld [vmem:[%s596 + $0xa8] sm:$0xff]
        %v652 = vld [vmem:[%s596 + $0xb0] sm:$0xff]
        %v653 = vld [vmem:[%s596 + $0xb8] sm:$0xff]
        %v654 = vld [vmem:[%s596 + $0xc0] sm:$0xff]
        %v655 = vld [vmem:[%s596 + $0xc8] sm:$0xff]
        %v656 = vld [vmem:[%s596 + $0xd0] sm:$0xff]
        %v657 = vld [vmem:[%s596 + $0xd8] sm:$0xff]
        %v658 = vld [vmem:[%s596 + $0xe0] sm:$0xff]
        %v659 = vld [vmem:[%s596 + $0xe8] sm:$0xff]
        %v660 = vld [vmem:[%s596 + $0xf0] sm:$0xff]
        %v661 = vld [vmem:[%s596 + $0xf8] sm:$0xff]
        %v662 = vld [vmem:[%s596 + $0x100] sm:$0xff]
        %v663 = vld [vmem:[%s596 + $0x108] sm:$0xff]
        %v664 = vld [vmem:[%s596 + $0x110] sm:$0xff]
        %v665 = vld [vmem:[%s596 + $0x118] sm:$0xff]
        %v666 = vld [vmem:[%s596 + $0x120] sm:$0xff]
        %v667 = vld [vmem:[%s596 + $0x128] sm:$0xff]
        %v668 = vld [vmem:[%s596 + $0x130] sm:$0xff]
        %v669 = vld [vmem:[%s596 + $0x138] sm:$0xff]
        %v670 = vadd.f32 %v630, %v640
        %v671 = vadd.f32 %v670, %v650
        %v672 = vadd.f32 %v671, %v660
        %v673 = vrot.slane %v672, 4
        %v674 = vadd.f32 %v672, %v673
        %v675 = vrot.slane %v674, 2
        %v676 = vadd.f32 %v674, %v675
        %v677 = vrot.slane %v676, 1
        %v678 = vadd.f32 %v676, %v677
        %v679 = vadd.f32 %v631, %v641
        %v680 = vadd.f32 %v679, %v651
        %v681 = vadd.f32 %v680, %v661
        %v682 = vrot.slane %v681, 4
        %v683 = vadd.f32 %v681, %v682
        %v684 = vrot.slane %v683, 2
        %v685 = vadd.f32 %v683, %v684
        %v686 = vrot.slane %v685, 1
        %v687 = vadd.f32 %v685, %v686
        %v688 = vadd.f32 %v632, %v642
        %v689 = vadd.f32 %v688, %v652
        %v690 = vadd.f32 %v689, %v662
        %v691 = vrot.slane %v690, 4
        %v692 = vadd.f32 %v690, %v691
        %v693 = vrot.slane %v692, 2
        %v694 = vadd.f32 %v692, %v693
        %v695 = vrot.slane %v694, 1
        %v696 = vadd.f32 %v694, %v695
        %v697 = vadd.f32 %v633, %v643
        %v698 = vadd.f32 %v697, %v653
        %v699 = vadd.f32 %v698, %v663
        %v700 = vrot.slane %v699, 4
        %v701 = vadd.f32 %v699, %v700
        %v702 = vrot.slane %v701, 2
        %v703 = vadd.f32 %v701, %v702
        %v704 = vrot.slane %v703, 1
        %v705 = vadd.f32 %v703, %v704
        %v706 = vadd.f32 %v634, %v644
        %v707 = vadd.f32 %v706, %v654
        %v708 = vadd.f32 %v707, %v664
        %v709 = vrot.slane %v708, 4
        %v710 = vadd.f32 %v708, %v709
        %v711 = vrot.slane %v710, 2
        %v712 = vadd.f32 %v710, %v711
        %v713 = vrot.slane %v712, 1
        %v714 = vadd.f32 %v712, %v713
        %v715 = vadd.f32 %v635, %v645
        %v716 = vadd.f32 %v715, %v655
        %v717 = vadd.f32 %v716, %v665
        %v718 = vrot.slane %v717, 4
        %v719 = vadd.f32 %v717, %v718
        %v720 = vrot.slane %v719, 2
        %v721 = vadd.f32 %v719, %v720
        %v722 = vrot.slane %v721, 1
        %v723 = vadd.f32 %v721, %v722
        %v724 = vadd.f32 %v636, %v646
        %v725 = vadd.f32 %v724, %v656
        %v726 = vadd.f32 %v725, %v666
        %v727 = vrot.slane %v726, 4
        %v728 = vadd.f32 %v726, %v727
        %v729 = vrot.slane %v728, 2
        %v730 = vadd.f32 %v728, %v729
        %v731 = vrot.slane %v730, 1
        %v732 = vadd.f32 %v730, %v731
        %v733 = vadd.f32 %v637, %v647
        %v734 = vadd.f32 %v733, %v657
        %v735 = vadd.f32 %v734, %v667
        %v736 = vrot.slane %v735, 4
        %v737 = vadd.f32 %v735, %v736
        %v738 = vrot.slane %v737, 2
        %v739 = vadd.f32 %v737, %v738
        %v740 = vrot.slane %v739, 1
        %v741 = vadd.f32 %v739, %v740
        %v742 = vadd.f32 %v638, %v648
        %v743 = vadd.f32 %v742, %v658
        %v744 = vadd.f32 %v743, %v668
        %v745 = vrot.slane %v744, 4
        %v746 = vadd.f32 %v744, %v745
        %v747 = vrot.slane %v746, 2
        %v748 = vadd.f32 %v746, %v747
        %v749 = vrot.slane %v748, 1
        %v750 = vadd.f32 %v748, %v749
        %v751 = vadd.f32 %v639, %v649
        %v752 = vadd.f32 %v751, %v659
        %v753 = vadd.f32 %v752, %v669
        %v754 = vrot.slane %v753, 4
        %v755 = vadd.f32 %v753, %v754
        %v756 = vrot.slane %v755, 2
        %v757 = vadd.f32 %v755, %v756
        %v758 = vrot.slane %v757, 1
        %v759 = vadd.f32 %v757, %v758
        %v760 = vmul.f32 %v678, 0.03125
        %v761 = vmul.f32 %v687, 0.03125
        %v762 = vmul.f32 %v696, 0.03125
        %v763 = vmul.f32 %v705, 0.03125
        %v764 = vmul.f32 %v714, 0.03125
        %v765 = vmul.f32 %v723, 0.03125
        %v766 = vmul.f32 %v732, 0.03125
        %v767 = vmul.f32 %v741, 0.03125
        %v768 = vmul.f32 %v750, 0.03125
        %v769 = vmul.f32 %v759, 0.03125
        %v770 = vsub.f32 %v630, %v760
        %v771 = vsub.f32 %v631, %v761
        %v772 = vsub.f32 %v632, %v762
        %v773 = vsub.f32 %v633, %v763
        %v774 = vsub.f32 %v634, %v764
        %v775 = vsub.f32 %v635, %v765
        %v776 = vsub.f32 %v636, %v766
        %v777 = vsub.f32 %v637, %v767
        %v778 = vsub.f32 %v638, %v768
        %v779 = vsub.f32 %v639, %v769
        %v780 = vsub.f32 %v640, %v760
        %v781 = vsub.f32 %v641, %v761
        %v782 = vsub.f32 %v642, %v762
        %v783 = vsub.f32 %v643, %v763
        %v784 = vsub.f32 %v644, %v764
        %v785 = vsub.f32 %v645, %v765
        %v786 = vsub.f32 %v646, %v766
        %v787 = vsub.f32 %v647, %v767
        %v788 = vsub.f32 %v648, %v768
        %v789 = vsub.f32 %v649, %v769
        %v790 = vsub.f32 %v650, %v760
        %v791 = vsub.f32 %v651, %v761
        %v792 = vsub.f32 %v652, %v762
        %v793 = vsub.f32 %v653, %v763
        %v794 = vsub.f32 %v654, %v764
        %v795 = vsub.f32 %v655, %v765
        %v796 = vsub.f32 %v656, %v766
        %v797 = vsub.f32 %v657, %v767
        %v798 = vsub.f32 %v658, %v768
        %v799 = vsub.f32 %v659, %v769
        %v800 = vsub.f32 %v660, %v760
        %v801 = vsub.f32 %v661, %v761
        %v802 = vsub.f32 %v662, %v762
        %v803 = vsub.f32 %v663, %v763
        %v804 = vsub.f32 %v664, %v764
        %v805 = vsub.f32 %v665, %v765
        %v806 = vsub.f32 %v666, %v766
        %v807 = vsub.f32 %v667, %v767
        %v808 = vsub.f32 %v668, %v768
        %v809 = vsub.f32 %v669, %v769
        %v810 = vmul.f32 %v770, %v770
        %v811 = vmul.f32 %v771, %v771
        %v812 = vmul.f32 %v772, %v772
        %v813 = vmul.f32 %v773, %v773
        %v814 = vmul.f32 %v774, %v774
        %v815 = vmul.f32 %v775, %v775
        %v816 = vmul.f32 %v776, %v776
        %v817 = vmul.f32 %v777, %v777
        %v818 = vmul.f32 %v778, %v778
        %v819 = vmul.f32 %v779, %v779
        %v820 = vmul.f32 %v780, %v780
        %v821 = vmul.f32 %v781, %v781
        %v822 = vmul.f32 %v782, %v782
        %v823 = vmul.f32 %v783, %v783
        %v824 = vmul.f32 %v784, %v784
        %v825 = vmul.f32 %v785, %v785
        %v826 = vmul.f32 %v786, %v786
        %v827 = vmul.f32 %v787, %v787
        %v828 = vmul.f32 %v788, %v788
        %v829 = vmul.f32 %v789, %v789
        %v830 = vmul.f32 %v790, %v790
        %v831 = vmul.f32 %v791, %v791
        %v832 = vmul.f32 %v792, %v792
        %v833 = vmul.f32 %v793, %v793
        %v834 = vmul.f32 %v794, %v794
        %v835 = vmul.f32 %v795, %v795
        %v836 = vmul.f32 %v796, %v796
        %v837 = vmul.f32 %v797, %v797
        %v838 = vmul.f32 %v798, %v798
        %v839 = vmul.f32 %v799, %v799
        %v840 = vmul.f32 %v800, %v800
        %v841 = vmul.f32 %v801, %v801
        %v842 = vmul.f32 %v802, %v802
        %v843 = vmul.f32 %v803, %v803
        %v844 = vmul.f32 %v804, %v804
        %v845 = vmul.f32 %v805, %v805
        %v846 = vmul.f32 %v806, %v806
        %v847 = vmul.f32 %v807, %v807
        %v848 = vmul.f32 %v808, %v808
        %v849 = vmul.f32 %v809, %v809
        %v850 = vadd.f32 %v810, %v820
        %v851 = vadd.f32 %v850, %v830
        %v852 = vadd.f32 %v851, %v840
        %v853 = vrot.slane %v852, 4
        %v854 = vadd.f32 %v852, %v853
        %v855 = vrot.slane %v854, 2
        %v856 = vadd.f32 %v854, %v855
        %v857 = vrot.slane %v856, 1
        %v858 = vadd.f32 %v856, %v857
        %v859 = vadd.f32 %v811, %v821
        %v860 = vadd.f32 %v859, %v831
        %v861 = vadd.f32 %v860, %v841
        %v862 = vrot.slane %v861, 4
        %v863 = vadd.f32 %v861, %v862
        %v864 = vrot.slane %v863, 2
        %v865 = vadd.f32 %v863, %v864
        %v866 = vrot.slane %v865, 1
        %v867 = vadd.f32 %v865, %v866
        %v868 = vadd.f32 %v812, %v822
        %v869 = vadd.f32 %v868, %v832
        %v870 = vadd.f32 %v869, %v842
        %v871 = vrot.slane %v870, 4
        %v872 = vadd.f32 %v870, %v871
        %v873 = vrot.slane %v872, 2
        %v874 = vadd.f32 %v872, %v873
        %v875 = vrot.slane %v874, 1
        %v876 = vadd.f32 %v874, %v875
        %v877 = vadd.f32 %v813, %v823
        %v878 = vadd.f32 %v877, %v833
        %v879 = vadd.f32 %v878, %v843
        %v880 = vrot.slane %v879, 4
        %v881 = vadd.f32 %v879, %v880
        %v882 = vrot.slane %v881, 2
        %v883 = vadd.f32 %v881, %v882
        %v884 = vrot.slane %v883, 1
        %v885 = vadd.f32 %v883, %v884
        %v886 = vadd.f32 %v814, %v824
        %v887 = vadd.f32 %v886, %v834
        %v888 = vadd.f32 %v887, %v844
        %v889 = vrot.slane %v888, 4
        %v890 = vadd.f32 %v888, %v889
        %v891 = vrot.slane %v890, 2
        %v892 = vadd.f32 %v890, %v891
        %v893 = vrot.slane %v892, 1
        %v894 = vadd.f32 %v892, %v893
        %v895 = vadd.f32 %v815, %v825
        %v896 = vadd.f32 %v895, %v835
        %v897 = vadd.f32 %v896, %v845
        %v898 = vrot.slane %v897, 4
        %v899 = vadd.f32 %v897, %v898
        %v900 = vrot.slane %v899, 2
        %v901 = vadd.f32 %v899, %v900
        %v902 = vrot.slane %v901, 1
        %v903 = vadd.f32 %v901, %v902
        %v904 = vadd.f32 %v816, %v826
        %v905 = vadd.f32 %v904, %v836
        %v906 = vadd.f32 %v905, %v846
        %v907 = vrot.slane %v906, 4
        %v908 = vadd.f32 %v906, %v907
        %v909 = vrot.slane %v908, 2
        %v910 = vadd.f32 %v908, %v909
        %v911 = vrot.slane %v910, 1
        %v912 = vadd.f32 %v910, %v911
        %v913 = vadd.f32 %v817, %v827
        %v914 = vadd.f32 %v913, %v837
        %v915 = vadd.f32 %v914, %v847
        %v916 = vrot.slane %v915, 4
        %v917 = vadd.f32 %v915, %v916
        %v918 = vrot.slane %v917, 2
        %v919 = vadd.f32 %v917, %v918
        %v920 = vrot.slane %v919, 1
        %v921 = vadd.f32 %v919, %v920
        %v922 = vadd.f32 %v818, %v828
        %v923 = vadd.f32 %v922, %v838
        %v924 = vadd.f32 %v923, %v848
        %v925 = vrot.slane %v924, 4
        %v926 = vadd.f32 %v924, %v925
        %v927 = vrot.slane %v926, 2
        %v928 = vadd.f32 %v926, %v927
        %v929 = vrot.slane %v928, 1
        %v930 = vadd.f32 %v928, %v929
        %v931 = vadd.f32 %v819, %v829
        %v932 = vadd.f32 %v931, %v839
        %v933 = vadd.f32 %v932, %v849
        %v934 = vrot.slane %v933, 4
        %v935 = vadd.f32 %v933, %v934
        %v936 = vrot.slane %v935, 2
        %v937 = vadd.f32 %v935, %v936
        %v938 = vrot.slane %v937, 1
        %v939 = vadd.f32 %v937, %v938
        %v940 = vmul.f32 %v858, 0.03125
        %v941 = vmul.f32 %v867, 0.03125
        %v942 = vmul.f32 %v876, 0.03125
        %v943 = vmul.f32 %v885, 0.03125
        %v944 = vmul.f32 %v894, 0.03125
        %v945 = vmul.f32 %v903, 0.03125
        %v946 = vmul.f32 %v912, 0.03125
        %v947 = vmul.f32 %v921, 0.03125
        %v948 = vmul.f32 %v930, 0.03125
        %v949 = vmul.f32 %v939, 0.03125
        %v950 = vadd.f32 %v940, 1e-05
        %v951 = vadd.f32 %v941, 1e-05
        %v952 = vadd.f32 %v942, 1e-05
        %v953 = vadd.f32 %v943, 1e-05
        %v954 = vadd.f32 %v944, 1e-05
        %v955 = vadd.f32 %v945, 1e-05
        %v956 = vadd.f32 %v946, 1e-05
        %v957 = vadd.f32 %v947, 1e-05
        %v958 = vadd.f32 %v948, 1e-05
        %v959 = vadd.f32 %v949, 1e-05
        %v960 = vrsqrt.pop %v950
        %v961 = vrsqrt.pop %v951
        %v962 = vrsqrt.pop %v952
        %v963 = vrsqrt.pop %v953
        %v964 = vrsqrt.pop %v954
        %v965 = vrsqrt.pop %v955
        %v966 = vrsqrt.pop %v956
        %v967 = vrsqrt.pop %v957
        %v968 = vrsqrt.pop %v958
        %v969 = vrsqrt.pop %v959
        %v970 = vmul.f32 %v770, %v960
        %v971 = vmul.f32 %v771, %v961
        %v972 = vmul.f32 %v772, %v962
        %v973 = vmul.f32 %v773, %v963
        %v974 = vmul.f32 %v774, %v964
        %v975 = vmul.f32 %v775, %v965
        %v976 = vmul.f32 %v776, %v966
        %v977 = vmul.f32 %v777, %v967
        %v978 = vmul.f32 %v778, %v968
        %v979 = vmul.f32 %v779, %v969
        %v980 = vmul.f32 %v780, %v960
        %v981 = vmul.f32 %v781, %v961
        %v982 = vmul.f32 %v782, %v962
        %v983 = vmul.f32 %v783, %v963
        %v984 = vmul.f32 %v784, %v964
        %v985 = vmul.f32 %v785, %v965
        %v986 = vmul.f32 %v786, %v966
        %v987 = vmul.f32 %v787, %v967
        %v988 = vmul.f32 %v788, %v968
        %v989 = vmul.f32 %v789, %v969
        %v990 = vmul.f32 %v790, %v960
        %v991 = vmul.f32 %v791, %v961
        %v992 = vmul.f32 %v792, %v962
        %v993 = vmul.f32 %v793, %v963
        %v994 = vmul.f32 %v794, %v964
        %v995 = vmul.f32 %v795, %v965
        %v996 = vmul.f32 %v796, %v966
        %v997 = vmul.f32 %v797, %v967
        %v998 = vmul.f32 %v798, %v968
        %v999 = vmul.f32 %v799, %v969
        %v1000 = vmul.f32 %v800, %v960
        %v1001 = vmul.f32 %v801, %v961
        %v1002 = vmul.f32 %v802, %v962
        %v1003 = vmul.f32 %v803, %v963
        %v1004 = vmul.f32 %v804, %v964
        %v1005 = vmul.f32 %v805, %v965
        %v1006 = vmul.f32 %v806, %v966
        %v1007 = vmul.f32 %v807, %v967
        %v1008 = vmul.f32 %v808, %v968
        %v1009 = vmul.f32 %v809, %v969
        %1011 = vset.pattern.permute.xlu0 0
        %1012 = vperm.xlu0 %1011, %v622
        %v1013 = vpop.permute.xlu0 %1012
        %1016 = vset.pattern.permute.xlu0 0
        %1017 = vperm.xlu0 %1016, %v623
        %v1018 = vpop.permute.xlu0 %1017
        %1021 = vset.pattern.permute.xlu0 0
        %1022 = vperm.xlu0 %1021, %v624
        %v1023 = vpop.permute.xlu0 %1022
        %1026 = vset.pattern.permute.xlu0 0
        %1027 = vperm.xlu0 %1026, %v625
        %v1028 = vpop.permute.xlu0 %1027
        %v1030 = vmul.f32 %v970, %v1013
        %v1031 = vmul.f32 %v971, %v1013
        %v1032 = vmul.f32 %v972, %v1013
        %v1033 = vmul.f32 %v973, %v1013
        %v1034 = vmul.f32 %v974, %v1013
        %v1035 = vmul.f32 %v975, %v1013
        %v1036 = vmul.f32 %v976, %v1013
        %v1037 = vmul.f32 %v977, %v1013
        %v1038 = vmul.f32 %v978, %v1013
        %v1039 = vmul.f32 %v979, %v1013
        %v1040 = vmul.f32 %v980, %v1018
        %v1041 = vmul.f32 %v981, %v1018
        %v1042 = vmul.f32 %v982, %v1018
        %v1043 = vmul.f32 %v983, %v1018
        %v1044 = vmul.f32 %v984, %v1018
        %v1045 = vmul.f32 %v985, %v1018
        %v1046 = vmul.f32 %v986, %v1018
        %v1047 = vmul.f32 %v987, %v1018
        %v1048 = vmul.f32 %v988, %v1018
        %v1049 = vmul.f32 %v989, %v1018
        %v1050 = vmul.f32 %v990, %v1023
        %v1051 = vmul.f32 %v991, %v1023
        %v1052 = vmul.f32 %v992, %v1023
        %v1053 = vmul.f32 %v993, %v1023
        %v1054 = vmul.f32 %v994, %v1023
        %v1055 = vmul.f32 %v995, %v1023
        %v1056 = vmul.f32 %v996, %v1023
        %v1057 = vmul.f32 %v997, %v1023
        %v1058 = vmul.f32 %v998, %v1023
        %v1059 = vmul.f32 %v999, %v1023
        %v1060 = vmul.f32 %v1000, %v1028
        %v1061 = vmul.f32 %v1001, %v1028
        %v1062 = vmul.f32 %v1002, %v1028
        %v1063 = vmul.f32 %v1003, %v1028
        %v1064 = vmul.f32 %v1004, %v1028
        %v1065 = vmul.f32 %v1005, %v1028
        %v1066 = vmul.f32 %v1006, %v1028
        %v1067 = vmul.f32 %v1007, %v1028
        %v1068 = vmul.f32 %v1008, %v1028
        %v1069 = vmul.f32 %v1009, %v1028
        %1071 = vset.pattern.permute.xlu0 0
        %1072 = vperm.xlu0 %1071, %v626
        %v1073 = vpop.permute.xlu0 %1072
        %1076 = vset.pattern.permute.xlu0 0
        %1077 = vperm.xlu0 %1076, %v627
        %v1078 = vpop.permute.xlu0 %1077
        %1081 = vset.pattern.permute.xlu0 0
        %1082 = vperm.xlu0 %1081, %v628
        %v1083 = vpop.permute.xlu0 %1082
        %1086 = vset.pattern.permute.xlu0 0
        %1087 = vperm.xlu0 %1086, %v629
        %v1088 = vpop.permute.xlu0 %1087
        %v1090 = vadd.f32 %v1030, %v1073
        %v1091 = vadd.f32 %v1031, %v1073
        %v1092 = vadd.f32 %v1032, %v1073
        %v1093 = vadd.f32 %v1033, %v1073
        %v1094 = vadd.f32 %v1034, %v1073
        %v1095 = vadd.f32 %v1035, %v1073
        %v1096 = vadd.f32 %v1036, %v1073
        %v1097 = vadd.f32 %v1037, %v1073
        %v1098 = vadd.f32 %v1038, %v1073
        %v1099 = vadd.f32 %v1039, %v1073
        %v1100 = vadd.f32 %v1040, %v1078
        %v1101 = vadd.f32 %v1041, %v1078
        %v1102 = vadd.f32 %v1042, %v1078
        %v1103 = vadd.f32 %v1043, %v1078
        %v1104 = vadd.f32 %v1044, %v1078
        %v1105 = vadd.f32 %v1045, %v1078
        %v1106 = vadd.f32 %v1046, %v1078
        %v1107 = vadd.f32 %v1047, %v1078
        %v1108 = vadd.f32 %v1048, %v1078
        %v1109 = vadd.f32 %v1049, %v1078
        %v1110 = vadd.f32 %v1050, %v1083
        %v1111 = vadd.f32 %v1051, %v1083
        %v1112 = vadd.f32 %v1052, %v1083
        %v1113 = vadd.f32 %v1053, %v1083
        %v1114 = vadd.f32 %v1054, %v1083
        %v1115 = vadd.f32 %v1055, %v1083
        %v1116 = vadd.f32 %v1056, %v1083
        %v1117 = vadd.f32 %v1057, %v1083
        %v1118 = vadd.f32 %v1058, %v1083
        %v1119 = vadd.f32 %v1059, %v1083
        %v1120 = vadd.f32 %v1060, %v1088
        %v1121 = vadd.f32 %v1061, %v1088
        %v1122 = vadd.f32 %v1062, %v1088
        %v1123 = vadd.f32 %v1063, %v1088
        %v1124 = vadd.f32 %v1064, %v1088
        %v1125 = vadd.f32 %v1065, %v1088
        %v1126 = vadd.f32 %v1066, %v1088
        %v1127 = vadd.f32 %v1067, %v1088
        %v1128 = vadd.f32 %v1068, %v1088
        %v1129 = vadd.f32 %v1069, %v1088
        %1130 = vst [vmem:[%s615] sm:$0xff] %v1090
        %1131 = vst [vmem:[%s615 + $0x8] sm:$0xff] %v1091
        %1132 = vst [vmem:[%s615 + $0x10] sm:$0xff] %v1092
        %1133 = vst [vmem:[%s615 + $0x18] sm:$0xff] %v1093
        %1134 = vst [vmem:[%s615 + $0x20] sm:$0xff] %v1094
        %1135 = vst [vmem:[%s615 + $0x28] sm:$0xff] %v1095
        %1136 = vst [vmem:[%s615 + $0x30] sm:$0xff] %v1096
        %1137 = vst [vmem:[%s615 + $0x38] sm:$0xff] %v1097
        %1138 = vst [vmem:[%s615 + $0x40] sm:$0xff] %v1098
        %1139 = vst [vmem:[%s615 + $0x48] sm:$0xff] %v1099
        %1140 = vst [vmem:[%s615 + $0x50] sm:$0xff] %v1100
        %1141 = vst [vmem:[%s615 + $0x58] sm:$0xff] %v1101
        %1142 = vst [vmem:[%s615 + $0x60] sm:$0xff] %v1102
        %1143 = vst [vmem:[%s615 + $0x68] sm:$0xff] %v1103
        %1144 = vst [vmem:[%s615 + $0x70] sm:$0xff] %v1104
        %1145 = vst [vmem:[%s615 + $0x78] sm:$0xff] %v1105
        %1146 = vst [vmem:[%s615 + $0x80] sm:$0xff] %v1106
        %1147 = vst [vmem:[%s615 + $0x88] sm:$0xff] %v1107
        %1148 = vst [vmem:[%s615 + $0x90] sm:$0xff] %v1108
        %1149 = vst [vmem:[%s615 + $0x98] sm:$0xff] %v1109
        %1150 = vst [vmem:[%s615 + $0xa0] sm:$0xff] %v1110
        %1151 = vst [vmem:[%s615 + $0xa8] sm:$0xff] %v1111
        %1152 = vst [vmem:[%s615 + $0xb0] sm:$0xff] %v1112
        %1153 = vst [vmem:[%s615 + $0xb8] sm:$0xff] %v1113
        %1154 = vst [vmem:[%s615 + $0xc0] sm:$0xff] %v1114
        %1155 = vst [vmem:[%s615 + $0xc8] sm:$0xff] %v1115
        %1156 = vst [vmem:[%s615 + $0xd0] sm:$0xff] %v1116
        %1157 = vst [vmem:[%s615 + $0xd8] sm:$0xff] %v1117
        %1158 = vst [vmem:[%s615 + $0xe0] sm:$0xff] %v1118
        %1159 = vst [vmem:[%s615 + $0xe8] sm:$0xff] %v1119
        %1160 = vst [vmem:[%s615 + $0xf0] sm:$0xff] %v1120
        %1161 = vst [vmem:[%s615 + $0xf8] sm:$0xff] %v1121
        %1162 = vst [vmem:[%s615 + $0x100] sm:$0xff] %v1122
        %1163 = vst [vmem:[%s615 + $0x108] sm:$0xff] %v1123
        %1164 = vst [vmem:[%s615 + $0x110] sm:$0xff] %v1124
        %1165 = vst [vmem:[%s615 + $0x118] sm:$0xff] %v1125
        %1166 = vst [vmem:[%s615 + $0x120] sm:$0xff] %v1126
        %1167 = vst [vmem:[%s615 + $0x128] sm:$0xff] %v1127
        %1168 = vst [vmem:[%s615 + $0x130] sm:$0xff] %v1128
        %1169 = vst [vmem:[%s615 + $0x138] sm:$0xff] %v1129
        %s1170 = sand.u32 %s106, 1
        %s1171 = sand.u32 %s106, 1
        %s1172 = smul.addr %s1171, 320
        %s1173 = scalar_lea.vmem [#allocation3], %s1172
        // Predicated region
        $region99: #{tpu_custom_call.1} parent=93 // pred_check
          %p1174 = pneg %p116
        $region100: #{tpu_custom_call.1} parent=93 // pred_check_branch
          %1176 = sbr.rel (%p1174) target = $region102
        $region101: #{tpu_custom_call.1} parent=93 // pred_region
          %s1177 = smul.u32 10, %s19
          %s1178 = ssub.s32 1, %s1177
          %s1179 = smul.u32 512, %s1178
          %p1180 = scmp.ne.s32.totalorder 0, %s1179
          %s1181 = smul.addr %s18, 4
          %s1182 = sadd.s32 %s1177, %s1181
          %s1183 = smul.addr %s1182, 8
          %s1184 = scalar_lea.vmem %s3, %s1183
          %s1185 = smul.u32 %s1178, 8
          // Predicated region
          $region103: #{tpu_custom_call.1} parent=101 // pred_check
            %p1186 = pneg %p1180
          $region104: #{tpu_custom_call.1} parent=101 // pred_check_branch
            %1188 = sbr.rel (%p1186) target = $region106
          $region105: #{tpu_custom_call.1} parent=101 // pred_region
            %p1189 = scmp.lt.u32.totalorder %s1185, 8
            %p1190 = pneg %p1189
            // Predicated region
            $region107: #{tpu_custom_call.1} parent=105 // pred_check
              _
            $region108: #{tpu_custom_call.1} parent=105 // pred_check_branch
              %1192 = sbr.rel (%p1189) target = $region110
            $region109: #{tpu_custom_call.1} parent=105 // pred_region
              %s1214 = sand.u32 %s1185, 7
              %p1215 = scmp.eq.s32.totalorder %s1214, 0
              // Predicated region
              $region122: #{tpu_custom_call.1} parent=109 // pred_check
                %p1216 = pneg %p1215
              $region123: #{tpu_custom_call.1} parent=109 // pred_check_branch
                %1218 = sbr.rel (%p1216) target = $region125
              $region124: #{tpu_custom_call.1} parent=109 // pred_region
                %s1219 = sshrl.u32 %s1185, 3
                %s1220 = sshrl.u32 %s1219, 4
                // While loop
                $region126: #{tpu_custom_call.1} parent=124 // loop_pre_header
                  _
                $region127: #{tpu_custom_call.1} parent=124 // loop_header
                  %s1224 = sphi 0, %s1226
                  %p1225 = scmp.ge.s32.totalorder %s1224, %s1220
                  %s1229 = sphi 0, %s1362
                  %s1230 = sphi %s1173, %s1365
                  %s1231 = sphi %s1184, %s1366
                $region128: #{tpu_custom_call.1} parent=124 // loop_header_branch
                  %1228 = sbr.rel (%p1225) target = $region132
                $region129: #{tpu_custom_call.1} parent=124 // loop_body
                  %v1232 = vld [vmem:[%s1230] sm:$0xff]
                  %1233 = vst [vmem:[%s1231] sm:$0xff] %v1232
                  %v1234 = vld [vmem:[%s1230 + $0x8] sm:$0xff]
                  %1235 = vst [vmem:[%s1231 + $0x8] sm:$0xff] %v1234
                  %v1236 = vld [vmem:[%s1230 + $0x10] sm:$0xff]
                  %1237 = vst [vmem:[%s1231 + $0x10] sm:$0xff] %v1236
                  %v1238 = vld [vmem:[%s1230 + $0x18] sm:$0xff]
                  %1239 = vst [vmem:[%s1231 + $0x18] sm:$0xff] %v1238
                  %v1240 = vld [vmem:[%s1230 + $0x20] sm:$0xff]
                  %1241 = vst [vmem:[%s1231 + $0x20] sm:$0xff] %v1240
                  %v1242 = vld [vmem:[%s1230 + $0x28] sm:$0xff]
                  %1243 = vst [vmem:[%s1231 + $0x28] sm:$0xff] %v1242
                  %v1244 = vld [vmem:[%s1230 + $0x30] sm:$0xff]
                  %1245 = vst [vmem:[%s1231 + $0x30] sm:$0xff] %v1244
                  %v1246 = vld [vmem:[%s1230 + $0x38] sm:$0xff]
                  %1247 = vst [vmem:[%s1231 + $0x38] sm:$0xff] %v1246
                  %v1248 = vld [vmem:[%s1230 + $0x40] sm:$0xff]
                  %1249 = vst [vmem:[%s1231 + $0x40] sm:$0xff] %v1248
                  %v1250 = vld [vmem:[%s1230 + $0x48] sm:$0xff]
                  %1251 = vst [vmem:[%s1231 + $0x48] sm:$0xff] %v1250
                  %v1252 = vld [vmem:[%s1230 + $0x50] sm:$0xff]
                  %1253 = vst [vmem:[%s1231 + $0x50] sm:$0xff] %v1252
                  %v1254 = vld [vmem:[%s1230 + $0x58] sm:$0xff]
                  %1255 = vst [vmem:[%s1231 + $0x58] sm:$0xff] %v1254
                  %v1256 = vld [vmem:[%s1230 + $0x60] sm:$0xff]
                  %1257 = vst [vmem:[%s1231 + $0x60] sm:$0xff] %v1256
                  %v1258 = vld [vmem:[%s1230 + $0x68] sm:$0xff]
                  %1259 = vst [vmem:[%s1231 + $0x68] sm:$0xff] %v1258
                  %v1260 = vld [vmem:[%s1230 + $0x70] sm:$0xff]
                  %1261 = vst [vmem:[%s1231 + $0x70] sm:$0xff] %v1260
                  %v1262 = vld [vmem:[%s1230 + $0x78] sm:$0xff]
                  %1263 = vst [vmem:[%s1231 + $0x78] sm:$0xff] %v1262
                  %v1264 = vld [vmem:[%s1230 + $0x50] sm:$0xff]
                  %1265 = vst [vmem:[%s1231 + $0x8] sm:$0xff] %v1264
                  %v1266 = vld [vmem:[%s1230 + $0x58] sm:$0xff]
                  %1267 = vst [vmem:[%s1231 + $0x10] sm:$0xff] %v1266
                  %v1268 = vld [vmem:[%s1230 + $0x60] sm:$0xff]
                  %1269 = vst [vmem:[%s1231 + $0x18] sm:$0xff] %v1268
                  %v1270 = vld [vmem:[%s1230 + $0x68] sm:$0xff]
                  %1271 = vst [vmem:[%s1231 + $0x20] sm:$0xff] %v1270
                  %v1272 = vld [vmem:[%s1230 + $0x70] sm:$0xff]
                  %1273 = vst [vmem:[%s1231 + $0x28] sm:$0xff] %v1272
                  %v1274 = vld [vmem:[%s1230 + $0x78] sm:$0xff]
                  %1275 = vst [vmem:[%s1231 + $0x30] sm:$0xff] %v1274
                  %v1276 = vld [vmem:[%s1230 + $0x80] sm:$0xff]
                  %1277 = vst [vmem:[%s1231 + $0x38] sm:$0xff] %v1276
                  %v1278 = vld [vmem:[%s1230 + $0x88] sm:$0xff]
                  %1279 = vst [vmem:[%s1231 + $0x40] sm:$0xff] %v1278
                  %v1280 = vld [vmem:[%s1230 + $0x90] sm:$0xff]
                  %1281 = vst [vmem:[%s1231 + $0x48] sm:$0xff] %v1280
                  %v1282 = vld [vmem:[%s1230 + $0x98] sm:$0xff]
                  %1283 = vst [vmem:[%s1231 + $0x50] sm:$0xff] %v1282
                  %v1284 = vld [vmem:[%s1230 + $0xa0] sm:$0xff]
                  %1285 = vst [vmem:[%s1231 + $0x58] sm:$0xff] %v1284
                  %v1286 = vld [vmem:[%s1230 + $0xa8] sm:$0xff]
                  %1287 = vst [vmem:[%s1231 + $0x60] sm:$0xff] %v1286
                  %v1288 = vld [vmem:[%s1230 + $0xb0] sm:$0xff]
                  %1289 = vst [vmem:[%s1231 + $0x68] sm:$0xff] %v1288
                  %v1290 = vld [vmem:[%s1230 + $0xb8] sm:$0xff]
                  %1291 = vst [vmem:[%s1231 + $0x70] sm:$0xff] %v1290
                  %v1292 = vld [vmem:[%s1230 + $0xc0] sm:$0xff]
                  %1293 = vst [vmem:[%s1231 + $0x78] sm:$0xff] %v1292
                  %v1294 = vld [vmem:[%s1230 + $0xc8] sm:$0xff]
                  %1295 = vst [vmem:[%s1231 + $0x80] sm:$0xff] %v1294
                  %v1296 = vld [vmem:[%s1230 + $0xa0] sm:$0xff]
                  %1297 = vst [vmem:[%s1231 + $0x10] sm:$0xff] %v1296
                  %v1298 = vld [vmem:[%s1230 + $0xa8] sm:$0xff]
                  %1299 = vst [vmem:[%s1231 + $0x18] sm:$0xff] %v1298
                  %v1300 = vld [vmem:[%s1230 + $0xb0] sm:$0xff]
                  %1301 = vst [vmem:[%s1231 + $0x20] sm:$0xff] %v1300
                  %v1302 = vld [vmem:[%s1230 + $0xb8] sm:$0xff]
                  %1303 = vst [vmem:[%s1231 + $0x28] sm:$0xff] %v1302
                  %v1304 = vld [vmem:[%s1230 + $0xc0] sm:$0xff]
                  %1305 = vst [vmem:[%s1231 + $0x30] sm:$0xff] %v1304
                  %v1306 = vld [vmem:[%s1230 + $0xc8] sm:$0xff]
                  %1307 = vst [vmem:[%s1231 + $0x38] sm:$0xff] %v1306
                  %v1308 = vld [vmem:[%s1230 + $0xd0] sm:$0xff]
                  %1309 = vst [vmem:[%s1231 + $0x40] sm:$0xff] %v1308
                  %v1310 = vld [vmem:[%s1230 + $0xd8] sm:$0xff]
                  %1311 = vst [vmem:[%s1231 + $0x48] sm:$0xff] %v1310
                  %v1312 = vld [vmem:[%s1230 + $0xe0] sm:$0xff]
                  %1313 = vst [vmem:[%s1231 + $0x50] sm:$0xff] %v1312
                  %v1314 = vld [vmem:[%s1230 + $0xe8] sm:$0xff]
                  %1315 = vst [vmem:[%s1231 + $0x58] sm:$0xff] %v1314
                  %v1316 = vld [vmem:[%s1230 + $0xf0] sm:$0xff]
                  %1317 = vst [vmem:[%s1231 + $0x60] sm:$0xff] %v1316
                  %v1318 = vld [vmem:[%s1230 + $0xf8] sm:$0xff]
                  %1319 = vst [vmem:[%s1231 + $0x68] sm:$0xff] %v1318
                  %v1320 = vld [vmem:[%s1230 + $0x100] sm:$0xff]
                  %1321 = vst [vmem:[%s1231 + $0x70] sm:$0xff] %v1320
                  %v1322 = vld [vmem:[%s1230 + $0x108] sm:$0xff]
                  %1323 = vst [vmem:[%s1231 + $0x78] sm:$0xff] %v1322
                  %v1324 = vld [vmem:[%s1230 + $0x110] sm:$0xff]
                  %1325 = vst [vmem:[%s1231 + $0x80] sm:$0xff] %v1324
                  %v1326 = vld [vmem:[%s1230 + $0x118] sm:$0xff]
                  %1327 = vst [vmem:[%s1231 + $0x88] sm:$0xff] %v1326
                  %v1328 = vld [vmem:[%s1230 + $0xf0] sm:$0xff]
                  %1329 = vst [vmem:[%s1231 + $0x18] sm:$0xff] %v1328
                  %v1330 = vld [vmem:[%s1230 + $0xf8] sm:$0xff]
                  %1331 = vst [vmem:[%s1231 + $0x20] sm:$0xff] %v1330
                  %v1332 = vld [vmem:[%s1230 + $0x100] sm:$0xff]
                  %1333 = vst [vmem:[%s1231 + $0x28] sm:$0xff] %v1332
                  %v1334 = vld [vmem:[%s1230 + $0x108] sm:$0xff]
                  %1335 = vst [vmem:[%s1231 + $0x30] sm:$0xff] %v1334
                  %v1336 = vld [vmem:[%s1230 + $0x110] sm:$0xff]
                  %1337 = vst [vmem:[%s1231 + $0x38] sm:$0xff] %v1336
                  %v1338 = vld [vmem:[%s1230 + $0x118] sm:$0xff]
                  %1339 = vst [vmem:[%s1231 + $0x40] sm:$0xff] %v1338
                  %v1340 = vld [vmem:[%s1230 + $0x120] sm:$0xff]
                  %1341 = vst [vmem:[%s1231 + $0x48] sm:$0xff] %v1340
                  %v1342 = vld [vmem:[%s1230 + $0x128] sm:$0xff]
                  %1343 = vst [vmem:[%s1231 + $0x50] sm:$0xff] %v1342
                  %v1344 = vld [vmem:[%s1230 + $0x130] sm:$0xff]
                  %1345 = vst [vmem:[%s1231 + $0x58] sm:$0xff] %v1344
                  %v1346 = vld [vmem:[%s1230 + $0x138] sm:$0xff]
                  %1347 = vst [vmem:[%s1231 + $0x60] sm:$0xff] %v1346
                  %v1348 = vld [vmem:[%s1230 + $0x140] sm:$0xff]
                  %1349 = vst [vmem:[%s1231 + $0x68] sm:$0xff] %v1348
                  %v1350 = vld [vmem:[%s1230 + $0x148] sm:$0xff]
                  %1351 = vst [vmem:[%s1231 + $0x70] sm:$0xff] %v1350
                  %v1352 = vld [vmem:[%s1230 + $0x150] sm:$0xff]
                  %1353 = vst [vmem:[%s1231 + $0x78] sm:$0xff] %v1352
                  %v1354 = vld [vmem:[%s1230 + $0x158] sm:$0xff]
                  %1355 = vst [vmem:[%s1231 + $0x80] sm:$0xff] %v1354
                  %v1356 = vld [vmem:[%s1230 + $0x160] sm:$0xff]
                  %1357 = vst [vmem:[%s1231 + $0x88] sm:$0xff] %v1356
                  %v1358 = vld [vmem:[%s1230 + $0x168] sm:$0xff]
                  %1359 = vst [vmem:[%s1231 + $0x90] sm:$0xff] %v1358
                  %s1360 = sadd.s32 1, %s1229
                  %p1361 = scmp.ge.s32.totalorder %s1360, %s1220
                  %s1362 = scalar_select %p1361, 0, %s1360
                  %s1363 = smul.u32 %s1362, 128
                  %s1364 = smul.u32 %s1362, 128
                  %s1365 = scalar_lea.vmem %s1173, %s1363 [#allocation3]
                  %s1366 = scalar_lea.vmem %s1184, %s1364
                $region130: #{tpu_custom_call.1} parent=124 // loop_footer
                  %s1226 = sadd.s32 %s1224, 1
                $region131: #{tpu_custom_call.1} parent=124 // loop_footer_branch
                  %1223 = sbr.rel target = $region127
                $region132: #{tpu_custom_call.1} parent=124 // loop_exit
                  _
                %s1367 = sshrl.u32 %s1219, 4
                %s1368 = sand.u32 %s1219, 15
                %s1369 = smul.u32 %s1367, 16
                %s1370 = smul.u32 128, %s1369
                %s1371 = sshra.s32 %s1370, 4
                %s1372 = scalar_lea.vmem %s1173, %s1371 [#allocation3]
                %s1373 = smul.u32 128, %s1369
                %s1374 = sshra.s32 %s1373, 4
                %s1375 = scalar_lea.vmem %s1184, %s1374
                // While loop
                $region133: #{tpu_custom_call.1} parent=124 // loop_pre_header
                  _
                $region134: #{tpu_custom_call.1} parent=124 // loop_header
                  %s1379 = sphi 0, %s1381
                  %p1380 = scmp.ge.s32.totalorder %s1379, %s1368
                  %s1384 = sphi 0, %s1397
                  %s1385 = sphi %s1372, %s1400
                  %s1386 = sphi %s1375, %s1401
                $region135: #{tpu_custom_call.1} parent=124 // loop_header_branch
                  %1383 = sbr.rel (%p1380) target = $region139
                $region136: #{tpu_custom_call.1} parent=124 // loop_body
                  %v1387 = vld [vmem:[%s1385] sm:$0xff]
                  %1388 = vst [vmem:[%s1386] sm:$0xff] %v1387
                  %v1389 = vld [vmem:[%s1385 + $0x50] sm:$0xff]
                  %1390 = vst [vmem:[%s1386 + $0x8] sm:$0xff] %v1389
                  %v1391 = vld [vmem:[%s1385 + $0xa0] sm:$0xff]
                  %1392 = vst [vmem:[%s1386 + $0x10] sm:$0xff] %v1391
                  %v1393 = vld [vmem:[%s1385 + $0xf0] sm:$0xff]
                  %1394 = vst [vmem:[%s1386 + $0x18] sm:$0xff] %v1393
                  %s1395 = sadd.s32 1, %s1384
                  %p1396 = scmp.ge.s32.totalorder %s1395, %s1368
                  %s1397 = scalar_select %p1396, 0, %s1395
                  %s1398 = smul.u32 %s1397, 8
                  %s1399 = smul.u32 %s1397, 8
                  %s1400 = scalar_lea.vmem %s1372, %s1398 [#allocation3]
                  %s1401 = scalar_lea.vmem %s1375, %s1399
                $region137: #{tpu_custom_call.1} parent=124 // loop_footer
                  %s1381 = sadd.s32 %s1379, 1
                $region138: #{tpu_custom_call.1} parent=124 // loop_footer_branch
                  %1378 = sbr.rel target = $region134
                $region139: #{tpu_custom_call.1} parent=124 // loop_exit
                  _
              $region125: #{tpu_custom_call.1} parent=109 // pred_fallthru
                _
              %p1402 = pneg %p1215
              // Predicated region
              $region140: #{tpu_custom_call.1} parent=109 // pred_check
                _
              $region141: #{tpu_custom_call.1} parent=109 // pred_check_branch
                %1404 = sbr.rel (%p1215) target = $region143
              $region142: #{tpu_custom_call.1} parent=109 // pred_region
                %s1405 = sand.u32 %s1185, 7
                %s1406 = ssub.s32 %s1185, %s1405
                %s1407 = scalar_lea.vmem %s1173, %s1406 [#allocation3]
                %s1408 = ssub.s32 %s1185, %s1405
                %s1409 = scalar_lea.vmem %s1184, %s1408
                %s1410 = sshrl.u32 %s1185, 3
                %s1411 = sshrl.u32 %s1410, 4
                // While loop
                $region144: #{tpu_custom_call.1} parent=142 // loop_pre_header
                  _
                $region145: #{tpu_custom_call.1} parent=142 // loop_header
                  %s1415 = sphi 0, %s1417
                  %p1416 = scmp.ge.s32.totalorder %s1415, %s1411
                  %s1420 = sphi 0, %s1553
                  %s1421 = sphi %s1173, %s1556
                  %s1422 = sphi %s1184, %s1557
                $region146: #{tpu_custom_call.1} parent=142 // loop_header_branch
                  %1419 = sbr.rel (%p1416) target = $region150
                $region147: #{tpu_custom_call.1} parent=142 // loop_body
                  %v1423 = vld [vmem:[%s1421] sm:$0xff]
                  %1424 = vst [vmem:[%s1422] sm:$0xff] %v1423
                  %v1425 = vld [vmem:[%s1421 + $0x8] sm:$0xff]
                  %1426 = vst [vmem:[%s1422 + $0x8] sm:$0xff] %v1425
                  %v1427 = vld [vmem:[%s1421 + $0x10] sm:$0xff]
                  %1428 = vst [vmem:[%s1422 + $0x10] sm:$0xff] %v1427
                  %v1429 = vld [vmem:[%s1421 + $0x18] sm:$0xff]
                  %1430 = vst [vmem:[%s1422 + $0x18] sm:$0xff] %v1429
                  %v1431 = vld [vmem:[%s1421 + $0x20] sm:$0xff]
                  %1432 = vst [vmem:[%s1422 + $0x20] sm:$0xff] %v1431
                  %v1433 = vld [vmem:[%s1421 + $0x28] sm:$0xff]
                  %1434 = vst [vmem:[%s1422 + $0x28] sm:$0xff] %v1433
                  %v1435 = vld [vmem:[%s1421 + $0x30] sm:$0xff]
                  %1436 = vst [vmem:[%s1422 + $0x30] sm:$0xff] %v1435
                  %v1437 = vld [vmem:[%s1421 + $0x38] sm:$0xff]
                  %1438 = vst [vmem:[%s1422 + $0x38] sm:$0xff] %v1437
                  %v1439 = vld [vmem:[%s1421 + $0x40] sm:$0xff]
                  %1440 = vst [vmem:[%s1422 + $0x40] sm:$0xff] %v1439
                  %v1441 = vld [vmem:[%s1421 + $0x48] sm:$0xff]
                  %1442 = vst [vmem:[%s1422 + $0x48] sm:$0xff] %v1441
                  %v1443 = vld [vmem:[%s1421 + $0x50] sm:$0xff]
                  %1444 = vst [vmem:[%s1422 + $0x50] sm:$0xff] %v1443
                  %v1445 = vld [vmem:[%s1421 + $0x58] sm:$0xff]
                  %1446 = vst [vmem:[%s1422 + $0x58] sm:$0xff] %v1445
                  %v1447 = vld [vmem:[%s1421 + $0x60] sm:$0xff]
                  %1448 = vst [vmem:[%s1422 + $0x60] sm:$0xff] %v1447
                  %v1449 = vld [vmem:[%s1421 + $0x68] sm:$0xff]
                  %1450 = vst [vmem:[%s1422 + $0x68] sm:$0xff] %v1449
                  %v1451 = vld [vmem:[%s1421 + $0x70] sm:$0xff]
                  %1452 = vst [vmem:[%s1422 + $0x70] sm:$0xff] %v1451
                  %v1453 = vld [vmem:[%s1421 + $0x78] sm:$0xff]
                  %1454 = vst [vmem:[%s1422 + $0x78] sm:$0xff] %v1453
                  %v1455 = vld [vmem:[%s1421 + $0x50] sm:$0xff]
                  %1456 = vst [vmem:[%s1422 + $0x8] sm:$0xff] %v1455
                  %v1457 = vld [vmem:[%s1421 + $0x58] sm:$0xff]
                  %1458 = vst [vmem:[%s1422 + $0x10] sm:$0xff] %v1457
                  %v1459 = vld [vmem:[%s1421 + $0x60] sm:$0xff]
                  %1460 = vst [vmem:[%s1422 + $0x18] sm:$0xff] %v1459
                  %v1461 = vld [vmem:[%s1421 + $0x68] sm:$0xff]
                  %1462 = vst [vmem:[%s1422 + $0x20] sm:$0xff] %v1461
                  %v1463 = vld [vmem:[%s1421 + $0x70] sm:$0xff]
                  %1464 = vst [vmem:[%s1422 + $0x28] sm:$0xff] %v1463
                  %v1465 = vld [vmem:[%s1421 + $0x78] sm:$0xff]
                  %1466 = vst [vmem:[%s1422 + $0x30] sm:$0xff] %v1465
                  %v1467 = vld [vmem:[%s1421 + $0x80] sm:$0xff]
                  %1468 = vst [vmem:[%s1422 + $0x38] sm:$0xff] %v1467
                  %v1469 = vld [vmem:[%s1421 + $0x88] sm:$0xff]
                  %1470 = vst [vmem:[%s1422 + $0x40] sm:$0xff] %v1469
                  %v1471 = vld [vmem:[%s1421 + $0x90] sm:$0xff]
                  %1472 = vst [vmem:[%s1422 + $0x48] sm:$0xff] %v1471
                  %v1473 = vld [vmem:[%s1421 + $0x98] sm:$0xff]
                  %1474 = vst [vmem:[%s1422 + $0x50] sm:$0xff] %v1473
                  %v1475 = vld [vmem:[%s1421 + $0xa0] sm:$0xff]
                  %1476 = vst [vmem:[%s1422 + $0x58] sm:$0xff] %v1475
                  %v1477 = vld [vmem:[%s1421 + $0xa8] sm:$0xff]
                  %1478 = vst [vmem:[%s1422 + $0x60] sm:$0xff] %v1477
                  %v1479 = vld [vmem:[%s1421 + $0xb0] sm:$0xff]
                  %1480 = vst [vmem:[%s1422 + $0x68] sm:$0xff] %v1479
                  %v1481 = vld [vmem:[%s1421 + $0xb8] sm:$0xff]
                  %1482 = vst [vmem:[%s1422 + $0x70] sm:$0xff] %v1481
                  %v1483 = vld [vmem:[%s1421 + $0xc0] sm:$0xff]
                  %1484 = vst [vmem:[%s1422 + $0x78] sm:$0xff] %v1483
                  %v1485 = vld [vmem:[%s1421 + $0xc8] sm:$0xff]
                  %1486 = vst [vmem:[%s1422 + $0x80] sm:$0xff] %v1485
                  %v1487 = vld [vmem:[%s1421 + $0xa0] sm:$0xff]
                  %1488 = vst [vmem:[%s1422 + $0x10] sm:$0xff] %v1487
                  %v1489 = vld [vmem:[%s1421 + $0xa8] sm:$0xff]
                  %1490 = vst [vmem:[%s1422 + $0x18] sm:$0xff] %v1489
                  %v1491 = vld [vmem:[%s1421 + $0xb0] sm:$0xff]
                  %1492 = vst [vmem:[%s1422 + $0x20] sm:$0xff] %v1491
                  %v1493 = vld [vmem:[%s1421 + $0xb8] sm:$0xff]
                  %1494 = vst [vmem:[%s1422 + $0x28] sm:$0xff] %v1493
                  %v1495 = vld [vmem:[%s1421 + $0xc0] sm:$0xff]
                  %1496 = vst [vmem:[%s1422 + $0x30] sm:$0xff] %v1495
                  %v1497 = vld [vmem:[%s1421 + $0xc8] sm:$0xff]
                  %1498 = vst [vmem:[%s1422 + $0x38] sm:$0xff] %v1497
                  %v1499 = vld [vmem:[%s1421 + $0xd0] sm:$0xff]
                  %1500 = vst [vmem:[%s1422 + $0x40] sm:$0xff] %v1499
                  %v1501 = vld [vmem:[%s1421 + $0xd8] sm:$0xff]
                  %1502 = vst [vmem:[%s1422 + $0x48] sm:$0xff] %v1501
                  %v1503 = vld [vmem:[%s1421 + $0xe0] sm:$0xff]
                  %1504 = vst [vmem:[%s1422 + $0x50] sm:$0xff] %v1503
                  %v1505 = vld [vmem:[%s1421 + $0xe8] sm:$0xff]
                  %1506 = vst [vmem:[%s1422 + $0x58] sm:$0xff] %v1505
                  %v1507 = vld [vmem:[%s1421 + $0xf0] sm:$0xff]
                  %1508 = vst [vmem:[%s1422 + $0x60] sm:$0xff] %v1507
                  %v1509 = vld [vmem:[%s1421 + $0xf8] sm:$0xff]
                  %1510 = vst [vmem:[%s1422 + $0x68] sm:$0xff] %v1509
                  %v1511 = vld [vmem:[%s1421 + $0x100] sm:$0xff]
                  %1512 = vst [vmem:[%s1422 + $0x70] sm:$0xff] %v1511
                  %v1513 = vld [vmem:[%s1421 + $0x108] sm:$0xff]
                  %1514 = vst [vmem:[%s1422 + $0x78] sm:$0xff] %v1513
                  %v1515 = vld [vmem:[%s1421 + $0x110] sm:$0xff]
                  %1516 = vst [vmem:[%s1422 + $0x80] sm:$0xff] %v1515
                  %v1517 = vld [vmem:[%s1421 + $0x118] sm:$0xff]
                  %1518 = vst [vmem:[%s1422 + $0x88] sm:$0xff] %v1517
                  %v1519 = vld [vmem:[%s1421 + $0xf0] sm:$0xff]
                  %1520 = vst [vmem:[%s1422 + $0x18] sm:$0xff] %v1519
                  %v1521 = vld [vmem:[%s1421 + $0xf8] sm:$0xff]
                  %1522 = vst [vmem:[%s1422 + $0x20] sm:$0xff] %v1521
                  %v1523 = vld [vmem:[%s1421 + $0x100] sm:$0xff]
                  %1524 = vst [vmem:[%s1422 + $0x28] sm:$0xff] %v1523
                  %v1525 = vld [vmem:[%s1421 + $0x108] sm:$0xff]
                  %1526 = vst [vmem:[%s1422 + $0x30] sm:$0xff] %v1525
                  %v1527 = vld [vmem:[%s1421 + $0x110] sm:$0xff]
                  %1528 = vst [vmem:[%s1422 + $0x38] sm:$0xff] %v1527
                  %v1529 = vld [vmem:[%s1421 + $0x118] sm:$0xff]
                  %1530 = vst [vmem:[%s1422 + $0x40] sm:$0xff] %v1529
                  %v1531 = vld [vmem:[%s1421 + $0x120] sm:$0xff]
                  %1532 = vst [vmem:[%s1422 + $0x48] sm:$0xff] %v1531
                  %v1533 = vld [vmem:[%s1421 + $0x128] sm:$0xff]
                  %1534 = vst [vmem:[%s1422 + $0x50] sm:$0xff] %v1533
                  %v1535 = vld [vmem:[%s1421 + $0x130] sm:$0xff]
                  %1536 = vst [vmem:[%s1422 + $0x58] sm:$0xff] %v1535
                  %v1537 = vld [vmem:[%s1421 + $0x138] sm:$0xff]
                  %1538 = vst [vmem:[%s1422 + $0x60] sm:$0xff] %v1537
                  %v1539 = vld [vmem:[%s1421 + $0x140] sm:$0xff]
                  %1540 = vst [vmem:[%s1422 + $0x68] sm:$0xff] %v1539
                  %v1541 = vld [vmem:[%s1421 + $0x148] sm:$0xff]
                  %1542 = vst [vmem:[%s1422 + $0x70] sm:$0xff] %v1541
                  %v1543 = vld [vmem:[%s1421 + $0x150] sm:$0xff]
                  %1544 = vst [vmem:[%s1422 + $0x78] sm:$0xff] %v1543
                  %v1545 = vld [vmem:[%s1421 + $0x158] sm:$0xff]
                  %1546 = vst [vmem:[%s1422 + $0x80] sm:$0xff] %v1545
                  %v1547 = vld [vmem:[%s1421 + $0x160] sm:$0xff]
                  %1548 = vst [vmem:[%s1422 + $0x88] sm:$0xff] %v1547
                  %v1549 = vld [vmem:[%s1421 + $0x168] sm:$0xff]
                  %1550 = vst [vmem:[%s1422 + $0x90] sm:$0xff] %v1549
                  %s1551 = sadd.s32 1, %s1420
                  %p1552 = scmp.ge.s32.totalorder %s1551, %s1411
                  %s1553 = scalar_select %p1552, 0, %s1551
                  %s1554 = smul.u32 %s1553, 128
                  %s1555 = smul.u32 %s1553, 128
                  %s1556 = scalar_lea.vmem %s1173, %s1554 [#allocation3]
                  %s1557 = scalar_lea.vmem %s1184, %s1555
                $region148: #{tpu_custom_call.1} parent=142 // loop_footer
                  %s1417 = sadd.s32 %s1415, 1
                $region149: #{tpu_custom_call.1} parent=142 // loop_footer_branch
                  %1414 = sbr.rel target = $region145
                $region150: #{tpu_custom_call.1} parent=142 // loop_exit
                  _
                %s1558 = sshrl.u32 %s1410, 4
                %s1559 = sand.u32 %s1410, 15
                %s1560 = smul.u32 %s1558, 16
                %s1561 = smul.u32 128, %s1560
                %s1562 = sshra.s32 %s1561, 4
                %s1563 = scalar_lea.vmem %s1173, %s1562 [#allocation3]
                %s1564 = smul.u32 128, %s1560
                %s1565 = sshra.s32 %s1564, 4
                %s1566 = scalar_lea.vmem %s1184, %s1565
                // While loop
                $region151: #{tpu_custom_call.1} parent=142 // loop_pre_header
                  _
                $region152: #{tpu_custom_call.1} parent=142 // loop_header
                  %s1570 = sphi 0, %s1572
                  %p1571 = scmp.ge.s32.totalorder %s1570, %s1559
                  %s1575 = sphi 0, %s1588
                  %s1576 = sphi %s1563, %s1591
                  %s1577 = sphi %s1566, %s1592
                $region153: #{tpu_custom_call.1} parent=142 // loop_header_branch
                  %1574 = sbr.rel (%p1571) target = $region157
                $region154: #{tpu_custom_call.1} parent=142 // loop_body
                  %v1578 = vld [vmem:[%s1576] sm:$0xff]
                  %1579 = vst [vmem:[%s1577] sm:$0xff] %v1578
                  %v1580 = vld [vmem:[%s1576 + $0x50] sm:$0xff]
                  %1581 = vst [vmem:[%s1577 + $0x8] sm:$0xff] %v1580
                  %v1582 = vld [vmem:[%s1576 + $0xa0] sm:$0xff]
                  %1583 = vst [vmem:[%s1577 + $0x10] sm:$0xff] %v1582
                  %v1584 = vld [vmem:[%s1576 + $0xf0] sm:$0xff]
                  %1585 = vst [vmem:[%s1577 + $0x18] sm:$0xff] %v1584
                  %s1586 = sadd.s32 1, %s1575
                  %p1587 = scmp.ge.s32.totalorder %s1586, %s1559
                  %s1588 = scalar_select %p1587, 0, %s1586
                  %s1589 = smul.u32 %s1588, 8
                  %s1590 = smul.u32 %s1588, 8
                  %s1591 = scalar_lea.vmem %s1563, %s1589 [#allocation3]
                  %s1592 = scalar_lea.vmem %s1566, %s1590
                $region155: #{tpu_custom_call.1} parent=142 // loop_footer
                  %s1572 = sadd.s32 %s1570, 1
                $region156: #{tpu_custom_call.1} parent=142 // loop_footer_branch
                  %1569 = sbr.rel target = $region152
                $region157: #{tpu_custom_call.1} parent=142 // loop_exit
                  _
                %s1593 = sshll.u32 1, %s1405
                %s1594 = ssub.s32 %s1593, 1
                loop: start=0, step=1, limit=1
                $region158: #{tpu_custom_call.1} parent=142 // loop_pre_header
                  _
                $region159: #{tpu_custom_call.1} parent=142 // loop_header
                  %s1596 = sphi 0, %s1600
                  %p1597 = scmp.ge.s32.totalorder %s1596, 1
                  %s1601 = sphi %s1407, %s1407
                  %s1602 = sphi %s1409, %s1409
                $region160: #{tpu_custom_call.1} parent=142 // loop_header_branch
                  %1599 = sbr.rel (%p1597) target = $region164
                $region161: #{tpu_custom_call.1} parent=142 // loop_body
                  %v1603 = vld [vmem:[%s1601] sm:%s1594]
                  %1604 = vst [vmem:[%s1602] sm:%s1594] %v1603
                  %v1605 = vld [vmem:[%s1601 + $0x50] sm:%s1594]
                  %1606 = vst [vmem:[%s1602 + $0x8] sm:%s1594] %v1605
                  %v1607 = vld [vmem:[%s1601 + $0xa0] sm:%s1594]
                  %1608 = vst [vmem:[%s1602 + $0x10] sm:%s1594] %v1607
                  %v1609 = vld [vmem:[%s1601 + $0xf0] sm:%s1594]
                  %1610 = vst [vmem:[%s1602 + $0x18] sm:%s1594] %v1609
                $region162: #{tpu_custom_call.1} parent=142 // loop_footer
                  %s1600 = sadd.s32 1, %s1596
                $region163: #{tpu_custom_call.1} parent=142 // loop_footer_branch
                  %1595 = sbr.rel target = $region159
                $region164: #{tpu_custom_call.1} parent=142 // loop_exit
                  _
              $region143: #{tpu_custom_call.1} parent=109 // pred_fallthru
                _
            $region110: #{tpu_custom_call.1} parent=105 // pred_fallthru
              _
            // Predicated region
            $region111: #{tpu_custom_call.1} parent=105 // pred_check
              %p1193 = pneg %p1189
            $region112: #{tpu_custom_call.1} parent=105 // pred_check_branch
              %1195 = sbr.rel (%p1193) target = $region114
            $region113: #{tpu_custom_call.1} parent=105 // pred_region
              %s1196 = sshll.u32 1, %s1185
              %s1197 = ssub.s32 %s1196, 1
              loop: start=0, step=1, limit=1
              $region115: #{tpu_custom_call.1} parent=113 // loop_pre_header
                _
              $region116: #{tpu_custom_call.1} parent=113 // loop_header
                %s1199 = sphi 0, %s1203
                %p1200 = scmp.ge.s32.totalorder %s1199, 1
                %s1204 = sphi %s1173, %s1173
                %s1205 = sphi %s1184, %s1184
              $region117: #{tpu_custom_call.1} parent=113 // loop_header_branch
                %1202 = sbr.rel (%p1200) target = $region121
              $region118: #{tpu_custom_call.1} parent=113 // loop_body
                %v1206 = vld [vmem:[%s1204] sm:%s1197]
                %1207 = vst [vmem:[%s1205] sm:%s1197] %v1206
                %v1208 = vld [vmem:[%s1204 + $0x50] sm:%s1197]
                %1209 = vst [vmem:[%s1205 + $0x8] sm:%s1197] %v1208
                %v1210 = vld [vmem:[%s1204 + $0xa0] sm:%s1197]
                %1211 = vst [vmem:[%s1205 + $0x10] sm:%s1197] %v1210
                %v1212 = vld [vmem:[%s1204 + $0xf0] sm:%s1197]
                %1213 = vst [vmem:[%s1205 + $0x18] sm:%s1197] %v1212
              $region119: #{tpu_custom_call.1} parent=113 // loop_footer
                %s1203 = sadd.s32 1, %s1199
              $region120: #{tpu_custom_call.1} parent=113 // loop_footer_branch
                %1198 = sbr.rel target = $region116
              $region121: #{tpu_custom_call.1} parent=113 // loop_exit
                _
            $region114: #{tpu_custom_call.1} parent=105 // pred_fallthru
              _
          $region106: #{tpu_custom_call.1} parent=101 // pred_fallthru
            _
          %1611 = vnop
        $region102: #{tpu_custom_call.1} parent=93 // pred_fallthru
          _
      $region94: #{tpu_custom_call.1} parent=5 // pred_fallthru
        _
      %p1612 = scmp.le.s32.totalorder 2, %s9
      // Predicated region
      $region165: #{tpu_custom_call.1} parent=5 // pred_check
        %p1613 = pneg %p1612
      $region166: #{tpu_custom_call.1} parent=5 // pred_check_branch
        %1615 = sbr.rel (%p1613) target = $region168
      $region167: #{tpu_custom_call.1} parent=5 // pred_region
        %s1616 = ssub.s32 %s9, 2
        // Predicated region
        $region169: #{tpu_custom_call.1} parent=167 // pred_check
          %p1617 = pneg %p122
        $region170: #{tpu_custom_call.1} parent=167 // pred_check_branch
          %1619 = sbr.rel (%p1617) target = $region172
        $region171: #{tpu_custom_call.1} parent=167 // pred_region
          %s1620 = sand.u32 %s107, 1
          %s1621 = sand.u32 %s107, 1
          %s1622 = smul.addr %s1621, 320
          %s1623 = scalar_lea.vmem [#allocation3], %s1622
        $region172: #{tpu_custom_call.1} parent=167 // pred_fallthru
          _
      $region168: #{tpu_custom_call.1} parent=5 // pred_fallthru
        _
    $region6: #{tpu_custom_call.1} parent=1 // loop_footer
      %s13 = sadd.s32 1, %s9
    $region7: #{tpu_custom_call.1} parent=1 // loop_footer_branch
      %8 = sbr.rel target = $region3
    $region8: #{tpu_custom_call.1} parent=1 // loop_exit
      _

</llo_original>
